<compile_context>
chip_gen: v6e
topology: v6e:2x2x1
jax: 0.10.0
libtpu: 0.0.40
codegen_flags: <defaults>
</compile_context>

<pallas_src>
import functools

import jax
import jax.numpy as jnp
from jax.experimental import pallas as pl
from jax.experimental.pallas import tpu as pltpu

THRESH = 0.5
DECAY = 0.2
TIME_STEP = 4


# ---------------------------------------------------------------------------
# Fused Pallas kernel: 3 spiking FC layers + firing-rate readout
# ---------------------------------------------------------------------------
def _snn_fused_kernel(s_ref, w1_ref, b1_ref, w2_ref, b2_ref, w3_ref, b3_ref,
                      out_ref, *, T, Bp):
    """s_ref: (T*Bp, 784) bf16 spikes. out_ref: (Bp, 10) f32 firing rate."""

    def lif_layer(x2d_bf16, w_ref, b_ref):
        """One layer: single MXU matmul for all T steps, then unrolled LIF.

        x2d_bf16: (T*Bp, Din) bf16 spikes.
        Returns a list of T (Bp, Dout) f32 spike tensors (one per time step).
        """
        dout = w_ref.shape[-1]
        # One big matmul instead of T tiny ones (full sublane / MXU-row fill).
        drive = jnp.dot(x2d_bf16, w_ref[...],
                        preferred_element_type=jnp.float32)
        drive = drive + b_ref[...]                    # (T*Bp, Dout) + (1, Dout)

        m = jnp.zeros((Bp, dout), jnp.float32)
        prev = jnp.zeros((Bp, dout), jnp.float32)
        outs = []
        for t in range(T):                            # T=4, fully unrolled, VPU only
            m = m * (DECAY * (1.0 - prev)) + drive[t * Bp:(t + 1) * Bp, :]
            prev = (m > THRESH).astype(jnp.float32)
            outs.append(prev)
        return outs

    # Layer 1: 784 -> 512
    spk1 = lif_layer(s_ref[...], w1_ref, b1_ref)
    s1 = jnp.concatenate(spk1, axis=0).astype(jnp.bfloat16)      # (T*Bp, 512)
    # Layer 2: 512 -> 256
    spk2 = lif_layer(s1, w2_ref, b2_ref)
    s2 = jnp.concatenate(spk2, axis=0).astype(jnp.bfloat16)      # (T*Bp, 256)
    # Layer 3: 256 -> 10
    spk3 = lif_layer(s2, w3_ref, b3_ref)                          # T x (Bp, 10)

    # BoundLast: firing-rate readout = mean of output spikes over time.
    acc = spk3[0]
    for t in range(1, T):
        acc = acc + spk3[t]
    out_ref[...] = acc * (1.0 / T)


# ---------------------------------------------------------------------------
# Wrapper
# ---------------------------------------------------------------------------
def init_linear(key, fan_in, fan_out):
    """PyTorch nn.Linear default init: U(-1/sqrt(fan_in), 1/sqrt(fan_in))."""
    kw, kb = jax.random.split(key)
    bound = 1.0 / jnp.sqrt(jnp.float32(fan_in))
    w = jax.random.uniform(kw, (fan_in, fan_out), jnp.float32, -bound, bound)
    b = jax.random.uniform(kb, (fan_out,), jnp.float32, -bound, bound)
    return w, b


@jax.jit
def mnist_fc_forward(x_, params, enc_key):
    """x_: (B, 1, 28, 28) float32 in [0, 1]. Returns (B, 10) firing rates."""
    B = x_.shape[0]
    Bp = ((B + 7) // 8) * 8                      # pad batch to 8 sublanes

    # 1) Bernoulli spike encoding over TIME_STEP steps (glue, matches
    #    `x > torch.rand(x.size())`), then flatten (BoundFlatten).
    x_rep = jnp.broadcast_to(x_[None], (TIME_STEP,) + x_.shape)
    rnd = jax.random.uniform(enc_key, x_rep.shape, jnp.float32)
    s = (x_rep > rnd).reshape(TIME_STEP, B, -1)              # (T, B, 784) bool
    s = jnp.pad(s, ((0, 0), (0, Bp - B), (0, 0)))            # zero-pad batch
    s = s.reshape(TIME_STEP * Bp, 784).astype(jnp.bfloat16)  # (T*Bp, 784)

    (w1, b1), (w2, b2), (w3, b3) = params
    kernel = functools.partial(_snn_fused_kernel, T=TIME_STEP, Bp=Bp)

    out = pl.pallas_call(
        kernel,
        out_shape=jax.ShapeDtypeStruct((Bp, 10), jnp.float32),
        in_specs=[pl.BlockSpec(memory_space=pltpu.MemorySpace.VMEM)] * 7,
        out_specs=pl.BlockSpec(memory_space=pltpu.MemorySpace.VMEM),
    )(
        s,
        w1.astype(jnp.bfloat16), b1.reshape(1, -1).astype(jnp.float32),
        w2.astype(jnp.bfloat16), b2.reshape(1, -1).astype(jnp.float32),
        w3.astype(jnp.bfloat16), b3.reshape(1, -1).astype(jnp.float32),
    )
    return out[:B]


if __name__ == "__main__":
    key = jax.random.PRNGKey(0)
    k_in, k_enc, k1, k2, k3 = jax.random.split(key, 5)

    B = 2
    x = jax.random.uniform(k_in, (B, 1, 28, 28), jnp.float32)  # MNIST-like input

    params = (
        init_linear(k1, 784, 512),
        init_linear(k2, 512, 256),
        init_linear(k3, 256, 10),
    )

    out = mnist_fc_forward(x, params, k_enc)
    out = jax.block_until_ready(out)
    assert out.shape == (B, 10) and out.dtype == jnp.float32
    print("KERNEL_OK")
</pallas_src>

<mosaic_0001>
module attributes {stable_mosaic.version = 11 : i64} {
  func.func @_snn_fused_kernel(%arg0: memref<32x784xbf16, #tpu.memory_space<vmem>>, %arg1: memref<784x512xbf16, #tpu.memory_space<vmem>>, %arg2: memref<1x512xf32, #tpu.memory_space<vmem>>, %arg3: memref<512x256xbf16, #tpu.memory_space<vmem>>, %arg4: memref<1x256xf32, #tpu.memory_space<vmem>>, %arg5: memref<256x10xbf16, #tpu.memory_space<vmem>>, %arg6: memref<1x10xf32, #tpu.memory_space<vmem>>, %arg7: memref<8x10xf32, #tpu.memory_space<vmem>>) attributes {dimension_semantics = [], scalar_prefetch = 0 : i64, scratch_operands = 0 : i64, tpu.core_type = #tpu.core_type<tc>} {
    %c0 = arith.constant 0 : index
    %c0_0 = arith.constant 0 : index
    %0 = vector.load %arg0[%c0, %c0_0] : memref<32x784xbf16, #tpu.memory_space<vmem>>, vector<32x784xbf16>
    %c0_1 = arith.constant 0 : index
    %c0_2 = arith.constant 0 : index
    %1 = vector.load %arg1[%c0_1, %c0_2] : memref<784x512xbf16, #tpu.memory_space<vmem>>, vector<784x512xbf16>
    %cst = arith.constant dense<0.000000e+00> : vector<32x512xf32>
    %2 = tpu.matmul %0, %1, %cst {dimension_numbers = #tpu.dot_dimension_numbers<[1], [0], [0], [1], [0, 0, 1, 1], [], []>} : vector<32x784xbf16>, vector<784x512xbf16>, vector<32x512xf32> -> vector<32x512xf32>
    %c0_3 = arith.constant 0 : index
    %c0_4 = arith.constant 0 : index
    %3 = vector.load %arg2[%c0_3, %c0_4] : memref<1x512xf32, #tpu.memory_space<vmem>>, vector<1x512xf32>
    %4 = vector.broadcast %3 : vector<1x512xf32> to vector<32x512xf32>
    %5 = arith.addf %2, %4 : vector<32x512xf32>
    %cst_5 = arith.constant 0.000000e+00 : f32
    %6 = vector.broadcast %cst_5 : f32 to vector<8x512xf32>
    %cst_6 = arith.constant 0.000000e+00 : f32
    %7 = vector.broadcast %cst_6 : f32 to vector<8x512xf32>
    %cst_7 = arith.constant 1.000000e+00 : f32
    %8 = vector.broadcast %cst_7 : f32 to vector<8x512xf32>
    %9 = arith.subf %8, %7 : vector<8x512xf32>
    %cst_8 = arith.constant 2.000000e-01 : f32
    %10 = vector.broadcast %cst_8 : f32 to vector<8x512xf32>
    %11 = arith.mulf %10, %9 : vector<8x512xf32>
    %12 = arith.mulf %6, %11 : vector<8x512xf32>
    %13 = vector.extract_strided_slice %5 {offsets = [0, 0], sizes = [8, 512], strides = [1, 1]} : vector<32x512xf32> to vector<8x512xf32>
    %14 = arith.addf %12, %13 : vector<8x512xf32>
    %cst_9 = arith.constant 5.000000e-01 : f32
    %15 = vector.broadcast %cst_9 : f32 to vector<8x512xf32>
    %16 = arith.cmpf ogt, %14, %15 : vector<8x512xf32>
    %17 = arith.extui %16 : vector<8x512xi1> to vector<8x512xi32>
    %18 = arith.sitofp %17 : vector<8x512xi32> to vector<8x512xf32>
    %cst_10 = arith.constant 1.000000e+00 : f32
    %19 = vector.broadcast %cst_10 : f32 to vector<8x512xf32>
    %20 = arith.subf %19, %18 : vector<8x512xf32>
    %cst_11 = arith.constant 2.000000e-01 : f32
    %21 = vector.broadcast %cst_11 : f32 to vector<8x512xf32>
    %22 = arith.mulf %21, %20 : vector<8x512xf32>
    %23 = arith.mulf %14, %22 : vector<8x512xf32>
    %24 = vector.extract_strided_slice %5 {offsets = [8, 0], sizes = [8, 512], strides = [1, 1]} : vector<32x512xf32> to vector<8x512xf32>
    %25 = arith.addf %23, %24 : vector<8x512xf32>
    %cst_12 = arith.constant 5.000000e-01 : f32
    %26 = vector.broadcast %cst_12 : f32 to vector<8x512xf32>
    %27 = arith.cmpf ogt, %25, %26 : vector<8x512xf32>
    %28 = arith.extui %27 : vector<8x512xi1> to vector<8x512xi32>
    %29 = arith.sitofp %28 : vector<8x512xi32> to vector<8x512xf32>
    %cst_13 = arith.constant 1.000000e+00 : f32
    %30 = vector.broadcast %cst_13 : f32 to vector<8x512xf32>
    %31 = arith.subf %30, %29 : vector<8x512xf32>
    %cst_14 = arith.constant 2.000000e-01 : f32
    %32 = vector.broadcast %cst_14 : f32 to vector<8x512xf32>
    %33 = arith.mulf %32, %31 : vector<8x512xf32>
    %34 = arith.mulf %25, %33 : vector<8x512xf32>
    %35 = vector.extract_strided_slice %5 {offsets = [16, 0], sizes = [8, 512], strides = [1, 1]} : vector<32x512xf32> to vector<8x512xf32>
    %36 = arith.addf %34, %35 : vector<8x512xf32>
    %cst_15 = arith.constant 5.000000e-01 : f32
    %37 = vector.broadcast %cst_15 : f32 to vector<8x512xf32>
    %38 = arith.cmpf ogt, %36, %37 : vector<8x512xf32>
    %39 = arith.extui %38 : vector<8x512xi1> to vector<8x512xi32>
    %40 = arith.sitofp %39 : vector<8x512xi32> to vector<8x512xf32>
    %cst_16 = arith.constant 1.000000e+00 : f32
    %41 = vector.broadcast %cst_16 : f32 to vector<8x512xf32>
    %42 = arith.subf %41, %40 : vector<8x512xf32>
    %cst_17 = arith.constant 2.000000e-01 : f32
    %43 = vector.broadcast %cst_17 : f32 to vector<8x512xf32>
    %44 = arith.mulf %43, %42 : vector<8x512xf32>
    %45 = arith.mulf %36, %44 : vector<8x512xf32>
    %46 = vector.extract_strided_slice %5 {offsets = [24, 0], sizes = [8, 512], strides = [1, 1]} : vector<32x512xf32> to vector<8x512xf32>
    %47 = arith.addf %45, %46 : vector<8x512xf32>
    %cst_18 = arith.constant 5.000000e-01 : f32
    %48 = vector.broadcast %cst_18 : f32 to vector<8x512xf32>
    %49 = arith.cmpf ogt, %47, %48 : vector<8x512xf32>
    %50 = arith.extui %49 : vector<8x512xi1> to vector<8x512xi32>
    %51 = arith.sitofp %50 : vector<8x512xi32> to vector<8x512xf32>
    %52 = tpu.concatenate %18, %29, %40, %51 in 0 : vector<8x512xf32>, vector<8x512xf32>, vector<8x512xf32>, vector<8x512xf32> -> vector<32x512xf32>
    %53 = arith.truncf %52 : vector<32x512xf32> to vector<32x512xbf16>
    %c0_19 = arith.constant 0 : index
    %c0_20 = arith.constant 0 : index
    %54 = vector.load %arg3[%c0_19, %c0_20] : memref<512x256xbf16, #tpu.memory_space<vmem>>, vector<512x256xbf16>
    %cst_21 = arith.constant dense<0.000000e+00> : vector<32x256xf32>
    %55 = tpu.matmul %53, %54, %cst_21 {dimension_numbers = #tpu.dot_dimension_numbers<[1], [0], [0], [1], [0, 0, 1, 1], [], []>} : vector<32x512xbf16>, vector<512x256xbf16>, vector<32x256xf32> -> vector<32x256xf32>
    %c0_22 = arith.constant 0 : index
    %c0_23 = arith.constant 0 : index
    %56 = vector.load %arg4[%c0_22, %c0_23] : memref<1x256xf32, #tpu.memory_space<vmem>>, vector<1x256xf32>
    %57 = vector.broadcast %56 : vector<1x256xf32> to vector<32x256xf32>
    %58 = arith.addf %55, %57 : vector<32x256xf32>
    %cst_24 = arith.constant 0.000000e+00 : f32
    %59 = vector.broadcast %cst_24 : f32 to vector<8x256xf32>
    %cst_25 = arith.constant 0.000000e+00 : f32
    %60 = vector.broadcast %cst_25 : f32 to vector<8x256xf32>
    %cst_26 = arith.constant 1.000000e+00 : f32
    %61 = vector.broadcast %cst_26 : f32 to vector<8x256xf32>
    %62 = arith.subf %61, %60 : vector<8x256xf32>
    %cst_27 = arith.constant 2.000000e-01 : f32
    %63 = vector.broadcast %cst_27 : f32 to vector<8x256xf32>
    %64 = arith.mulf %63, %62 : vector<8x256xf32>
    %65 = arith.mulf %59, %64 : vector<8x256xf32>
    %66 = vector.extract_strided_slice %58 {offsets = [0, 0], sizes = [8, 256], strides = [1, 1]} : vector<32x256xf32> to vector<8x256xf32>
    %67 = arith.addf %65, %66 : vector<8x256xf32>
    %cst_28 = arith.constant 5.000000e-01 : f32
    %68 = vector.broadcast %cst_28 : f32 to vector<8x256xf32>
    %69 = arith.cmpf ogt, %67, %68 : vector<8x256xf32>
    %70 = arith.extui %69 : vector<8x256xi1> to vector<8x256xi32>
    %71 = arith.sitofp %70 : vector<8x256xi32> to vector<8x256xf32>
    %cst_29 = arith.constant 1.000000e+00 : f32
    %72 = vector.broadcast %cst_29 : f32 to vector<8x256xf32>
    %73 = arith.subf %72, %71 : vector<8x256xf32>
    %cst_30 = arith.constant 2.000000e-01 : f32
    %74 = vector.broadcast %cst_30 : f32 to vector<8x256xf32>
    %75 = arith.mulf %74, %73 : vector<8x256xf32>
    %76 = arith.mulf %67, %75 : vector<8x256xf32>
    %77 = vector.extract_strided_slice %58 {offsets = [8, 0], sizes = [8, 256], strides = [1, 1]} : vector<32x256xf32> to vector<8x256xf32>
    %78 = arith.addf %76, %77 : vector<8x256xf32>
    %cst_31 = arith.constant 5.000000e-01 : f32
    %79 = vector.broadcast %cst_31 : f32 to vector<8x256xf32>
    %80 = arith.cmpf ogt, %78, %79 : vector<8x256xf32>
    %81 = arith.extui %80 : vector<8x256xi1> to vector<8x256xi32>
    %82 = arith.sitofp %81 : vector<8x256xi32> to vector<8x256xf32>
    %cst_32 = arith.constant 1.000000e+00 : f32
    %83 = vector.broadcast %cst_32 : f32 to vector<8x256xf32>
    %84 = arith.subf %83, %82 : vector<8x256xf32>
    %cst_33 = arith.constant 2.000000e-01 : f32
    %85 = vector.broadcast %cst_33 : f32 to vector<8x256xf32>
    %86 = arith.mulf %85, %84 : vector<8x256xf32>
    %87 = arith.mulf %78, %86 : vector<8x256xf32>
    %88 = vector.extract_strided_slice %58 {offsets = [16, 0], sizes = [8, 256], strides = [1, 1]} : vector<32x256xf32> to vector<8x256xf32>
    %89 = arith.addf %87, %88 : vector<8x256xf32>
    %cst_34 = arith.constant 5.000000e-01 : f32
    %90 = vector.broadcast %cst_34 : f32 to vector<8x256xf32>
    %91 = arith.cmpf ogt, %89, %90 : vector<8x256xf32>
    %92 = arith.extui %91 : vector<8x256xi1> to vector<8x256xi32>
    %93 = arith.sitofp %92 : vector<8x256xi32> to vector<8x256xf32>
    %cst_35 = arith.constant 1.000000e+00 : f32
    %94 = vector.broadcast %cst_35 : f32 to vector<8x256xf32>
    %95 = arith.subf %94, %93 : vector<8x256xf32>
    %cst_36 = arith.constant 2.000000e-01 : f32
    %96 = vector.broadcast %cst_36 : f32 to vector<8x256xf32>
    %97 = arith.mulf %96, %95 : vector<8x256xf32>
    %98 = arith.mulf %89, %97 : vector<8x256xf32>
    %99 = vector.extract_strided_slice %58 {offsets = [24, 0], sizes = [8, 256], strides = [1, 1]} : vector<32x256xf32> to vector<8x256xf32>
    %100 = arith.addf %98, %99 : vector<8x256xf32>
    %cst_37 = arith.constant 5.000000e-01 : f32
    %101 = vector.broadcast %cst_37 : f32 to vector<8x256xf32>
    %102 = arith.cmpf ogt, %100, %101 : vector<8x256xf32>
    %103 = arith.extui %102 : vector<8x256xi1> to vector<8x256xi32>
    %104 = arith.sitofp %103 : vector<8x256xi32> to vector<8x256xf32>
    %105 = tpu.concatenate %71, %82, %93, %104 in 0 : vector<8x256xf32>, vector<8x256xf32>, vector<8x256xf32>, vector<8x256xf32> -> vector<32x256xf32>
    %106 = arith.truncf %105 : vector<32x256xf32> to vector<32x256xbf16>
    %c0_38 = arith.constant 0 : index
    %c0_39 = arith.constant 0 : index
    %107 = vector.load %arg5[%c0_38, %c0_39] : memref<256x10xbf16, #tpu.memory_space<vmem>>, vector<256x10xbf16>
    %cst_40 = arith.constant dense<0.000000e+00> : vector<32x10xf32>
    %108 = tpu.matmul %106, %107, %cst_40 {dimension_numbers = #tpu.dot_dimension_numbers<[1], [0], [0], [1], [0, 0, 1, 1], [], []>} : vector<32x256xbf16>, vector<256x10xbf16>, vector<32x10xf32> -> vector<32x10xf32>
    %c0_41 = arith.constant 0 : index
    %c0_42 = arith.constant 0 : index
    %109 = vector.load %arg6[%c0_41, %c0_42] : memref<1x10xf32, #tpu.memory_space<vmem>>, vector<1x10xf32>
    %110 = vector.broadcast %109 : vector<1x10xf32> to vector<32x10xf32>
    %111 = arith.addf %108, %110 : vector<32x10xf32>
    %cst_43 = arith.constant 0.000000e+00 : f32
    %112 = vector.broadcast %cst_43 : f32 to vector<8x10xf32>
    %cst_44 = arith.constant 0.000000e+00 : f32
    %113 = vector.broadcast %cst_44 : f32 to vector<8x10xf32>
    %cst_45 = arith.constant 1.000000e+00 : f32
    %114 = vector.broadcast %cst_45 : f32 to vector<8x10xf32>
    %115 = arith.subf %114, %113 : vector<8x10xf32>
    %cst_46 = arith.constant 2.000000e-01 : f32
    %116 = vector.broadcast %cst_46 : f32 to vector<8x10xf32>
    %117 = arith.mulf %116, %115 : vector<8x10xf32>
    %118 = arith.mulf %112, %117 : vector<8x10xf32>
    %119 = vector.extract_strided_slice %111 {offsets = [0, 0], sizes = [8, 10], strides = [1, 1]} : vector<32x10xf32> to vector<8x10xf32>
    %120 = arith.addf %118, %119 : vector<8x10xf32>
    %cst_47 = arith.constant 5.000000e-01 : f32
    %121 = vector.broadcast %cst_47 : f32 to vector<8x10xf32>
    %122 = arith.cmpf ogt, %120, %121 : vector<8x10xf32>
    %123 = arith.extui %122 : vector<8x10xi1> to vector<8x10xi32>
    %124 = arith.sitofp %123 : vector<8x10xi32> to vector<8x10xf32>
    %cst_48 = arith.constant 1.000000e+00 : f32
    %125 = vector.broadcast %cst_48 : f32 to vector<8x10xf32>
    %126 = arith.subf %125, %124 : vector<8x10xf32>
    %cst_49 = arith.constant 2.000000e-01 : f32
    %127 = vector.broadcast %cst_49 : f32 to vector<8x10xf32>
    %128 = arith.mulf %127, %126 : vector<8x10xf32>
    %129 = arith.mulf %120, %128 : vector<8x10xf32>
    %130 = vector.extract_strided_slice %111 {offsets = [8, 0], sizes = [8, 10], strides = [1, 1]} : vector<32x10xf32> to vector<8x10xf32>
    %131 = arith.addf %129, %130 : vector<8x10xf32>
    %cst_50 = arith.constant 5.000000e-01 : f32
    %132 = vector.broadcast %cst_50 : f32 to vector<8x10xf32>
    %133 = arith.cmpf ogt, %131, %132 : vector<8x10xf32>
    %134 = arith.extui %133 : vector<8x10xi1> to vector<8x10xi32>
    %135 = arith.sitofp %134 : vector<8x10xi32> to vector<8x10xf32>
    %cst_51 = arith.constant 1.000000e+00 : f32
    %136 = vector.broadcast %cst_51 : f32 to vector<8x10xf32>
    %137 = arith.subf %136, %135 : vector<8x10xf32>
    %cst_52 = arith.constant 2.000000e-01 : f32
    %138 = vector.broadcast %cst_52 : f32 to vector<8x10xf32>
    %139 = arith.mulf %138, %137 : vector<8x10xf32>
    %140 = arith.mulf %131, %139 : vector<8x10xf32>
    %141 = vector.extract_strided_slice %111 {offsets = [16, 0], sizes = [8, 10], strides = [1, 1]} : vector<32x10xf32> to vector<8x10xf32>
    %142 = arith.addf %140, %141 : vector<8x10xf32>
    %cst_53 = arith.constant 5.000000e-01 : f32
    %143 = vector.broadcast %cst_53 : f32 to vector<8x10xf32>
    %144 = arith.cmpf ogt, %142, %143 : vector<8x10xf32>
    %145 = arith.extui %144 : vector<8x10xi1> to vector<8x10xi32>
    %146 = arith.sitofp %145 : vector<8x10xi32> to vector<8x10xf32>
    %cst_54 = arith.constant 1.000000e+00 : f32
    %147 = vector.broadcast %cst_54 : f32 to vector<8x10xf32>
    %148 = arith.subf %147, %146 : vector<8x10xf32>
    %cst_55 = arith.constant 2.000000e-01 : f32
    %149 = vector.broadcast %cst_55 : f32 to vector<8x10xf32>
    %150 = arith.mulf %149, %148 : vector<8x10xf32>
    %151 = arith.mulf %142, %150 : vector<8x10xf32>
    %152 = vector.extract_strided_slice %111 {offsets = [24, 0], sizes = [8, 10], strides = [1, 1]} : vector<32x10xf32> to vector<8x10xf32>
    %153 = arith.addf %151, %152 : vector<8x10xf32>
    %cst_56 = arith.constant 5.000000e-01 : f32
    %154 = vector.broadcast %cst_56 : f32 to vector<8x10xf32>
    %155 = arith.cmpf ogt, %153, %154 : vector<8x10xf32>
    %156 = arith.extui %155 : vector<8x10xi1> to vector<8x10xi32>
    %157 = arith.sitofp %156 : vector<8x10xi32> to vector<8x10xf32>
    %158 = arith.addf %124, %135 : vector<8x10xf32>
    %159 = arith.addf %158, %146 : vector<8x10xf32>
    %160 = arith.addf %159, %157 : vector<8x10xf32>
    %cst_57 = arith.constant 2.500000e-01 : f32
    %161 = vector.broadcast %cst_57 : f32 to vector<8x10xf32>
    %162 = arith.mulf %160, %161 : vector<8x10xf32>
    %c0_58 = arith.constant 0 : index
    %c0_59 = arith.constant 0 : index
    %163 = vector.load %arg7[%c0_58, %c0_59] : memref<8x10xf32, #tpu.memory_space<vmem>>, vector<8x10xf32>
    tpu.vector_store %arg7[%c0_58, %c0_59], %162 {strides = array<i32>} : memref<8x10xf32, #tpu.memory_space<vmem>>, vector<8x10xf32>,
    return
  }
}

</mosaic_0001>

<llo_original>
// kernel: mnist_fc_forward.1
$region0: #{mnist_fc_forward.1}
  #allocation0 [shape = 'u32[]', space=smem, size = 0x4, offset = 0x4, fixed_abs, tag = 'smem constant byte address 0x4 - core index']
  #allocation1 [shape = 'u32[144,128]{1,0:T(1,128)}', space=vmem, size = 0x12000, scoped, tag = 'internal scratch']
  %s0 = inlined_call_operand.vmem [shape: bf16[32,784], index: 0, kind: input, shape index: {}]
  %s1 = inlined_call_operand.vmem [shape: bf16[784,512], index: 1, kind: input, shape index: {}]
  %s2 = inlined_call_operand.vmem [shape: f32[1,512], index: 2, kind: input, shape index: {}]
  %s3 = inlined_call_operand.vmem [shape: bf16[512,256], index: 3, kind: input, shape index: {}]
  %s4 = inlined_call_operand.vmem [shape: f32[1,256], index: 4, kind: input, shape index: {}]
  %s5 = inlined_call_operand.vmem [shape: bf16[256,10], index: 5, kind: input, shape index: {}]
  %s6 = inlined_call_operand.vmem [shape: f32[1,10], index: 6, kind: input, shape index: {}]
  %s7 = inlined_call_operand.vmem [shape: f32[8,10], index: 7, kind: output, shape index: {}]
  %s8 = sld [smem:[#allocation0]]
  $region38: #{mnist_fc_forward.1} parent=0
    _
  %s10 = ssub.s32 1, %s8
  %s11 = scalar_select 0, %s10, %s8
  // Predicated region
  $region2: #{mnist_fc_forward.1} parent=0 // pred_check
    _
  $region3: #{mnist_fc_forward.1} parent=0 // pred_check_branch
    %13 = sbr.rel (0) target = $region5
  $region4: #{mnist_fc_forward.1} parent=0 // pred_region
    _
  $region5: #{mnist_fc_forward.1} parent=0 // pred_fallthru
    _
  // Predicated region
  $region6: #{mnist_fc_forward.1} parent=0 // pred_check
    _
  $region7: #{mnist_fc_forward.1} parent=0 // pred_check_branch
    %15 = sbr.rel (0) target = $region9
  $region8: #{mnist_fc_forward.1} parent=0 // pred_region
    _
  $region9: #{mnist_fc_forward.1} parent=0 // pred_fallthru
    _
  // Predicated region
  $region10: #{mnist_fc_forward.1} parent=0 // pred_check
    _
  $region11: #{mnist_fc_forward.1} parent=0 // pred_check_branch
    %17 = sbr.rel (0) target = $region13
  $region12: #{mnist_fc_forward.1} parent=0 // pred_region
    _
  $region13: #{mnist_fc_forward.1} parent=0 // pred_fallthru
    _
  // Predicated region
  $region14: #{mnist_fc_forward.1} parent=0 // pred_check
    _
  $region15: #{mnist_fc_forward.1} parent=0 // pred_check_branch
    %19 = sbr.rel (0) target = $region17
  $region16: #{mnist_fc_forward.1} parent=0 // pred_region
    _
  $region17: #{mnist_fc_forward.1} parent=0 // pred_fallthru
    _
  // Predicated region
  $region18: #{mnist_fc_forward.1} parent=0 // pred_check
    _
  $region19: #{mnist_fc_forward.1} parent=0 // pred_check_branch
    %21 = sbr.rel (0) target = $region21
  $region20: #{mnist_fc_forward.1} parent=0 // pred_region
    _
  $region21: #{mnist_fc_forward.1} parent=0 // pred_fallthru
    _
  // Predicated region
  $region22: #{mnist_fc_forward.1} parent=0 // pred_check
    _
  $region23: #{mnist_fc_forward.1} parent=0 // pred_check_branch
    %23 = sbr.rel (0) target = $region25
  $region24: #{mnist_fc_forward.1} parent=0 // pred_region
    _
  $region25: #{mnist_fc_forward.1} parent=0 // pred_fallthru
    _
  // Predicated region
  $region26: #{mnist_fc_forward.1} parent=0 // pred_check
    _
  $region27: #{mnist_fc_forward.1} parent=0 // pred_check_branch
    %25 = sbr.rel (0) target = $region29
  $region28: #{mnist_fc_forward.1} parent=0 // pred_region
    _
  $region29: #{mnist_fc_forward.1} parent=0 // pred_fallthru
    _
  %v27 = vld [vmem:[%s0] sm:$0xff]
  %v28 = vld [vmem:[%s0 + $0x8] sm:$0xff]
  %v29 = vld [vmem:[%s0 + $0x10] sm:$0xff]
  %v30 = vld [vmem:[%s0 + $0x18] sm:$0xf]
  %v31 = vld [vmem:[%s0 + $0x1c] sm:$0xff]
  %v32 = vld [vmem:[%s0 + $0x24] sm:$0xff]
  %v33 = vld [vmem:[%s0 + $0x2c] sm:$0xff]
  %v34 = vld [vmem:[%s0 + $0x34] sm:$0xf]
  %v35 = vld [vmem:[%s0 + $0x38] sm:$0xff]
  %v36 = vld [vmem:[%s0 + $0x40] sm:$0xff]
  %v37 = vld [vmem:[%s0 + $0x48] sm:$0xff]
  %v38 = vld [vmem:[%s0 + $0x50] sm:$0xf]
  %v39 = vld [vmem:[%s0 + $0x54] sm:$0xff]
  %v40 = vld [vmem:[%s0 + $0x5c] sm:$0xff]
  %v41 = vld [vmem:[%s0 + $0x64] sm:$0xff]
  %v42 = vld [vmem:[%s0 + $0x6c] sm:$0xf]
  %v43 = vld [vmem:[%s1] sm:$0xff]
  %v44 = vld [vmem:[%s1 + $0x8] sm:$0xff]
  %v45 = vld [vmem:[%s1 + $0x10] sm:$0xff]
  %v46 = vld [vmem:[%s1 + $0x18] sm:$0xff]
  %v47 = vld [vmem:[%s1 + $0x20] sm:$0xff]
  %v48 = vld [vmem:[%s1 + $0x28] sm:$0xff]
  %v49 = vld [vmem:[%s1 + $0x30] sm:$0xff]
  %v50 = vld [vmem:[%s1 + $0x38] sm:$0xff]
  %v51 = vld [vmem:[%s1 + $0x40] sm:$0xff]
  %v52 = vld [vmem:[%s1 + $0x48] sm:$0xff]
  %v53 = vld [vmem:[%s1 + $0x50] sm:$0xff]
  %v54 = vld [vmem:[%s1 + $0x58] sm:$0xff]
  %v55 = vld [vmem:[%s1 + $0x60] sm:$0xff]
  %v56 = vld [vmem:[%s1 + $0x68] sm:$0xff]
  %v57 = vld [vmem:[%s1 + $0x70] sm:$0xff]
  %v58 = vld [vmem:[%s1 + $0x78] sm:$0xff]
  %v59 = vld [vmem:[%s1 + $0x80] sm:$0xff]
  %v60 = vld [vmem:[%s1 + $0x88] sm:$0xff]
  %v61 = vld [vmem:[%s1 + $0x90] sm:$0xff]
  %v62 = vld [vmem:[%s1 + $0x98] sm:$0xff]
  %v63 = vld [vmem:[%s1 + $0xa0] sm:$0xff]
  %v64 = vld [vmem:[%s1 + $0xa8] sm:$0xff]
  %v65 = vld [vmem:[%s1 + $0xb0] sm:$0xff]
  %v66 = vld [vmem:[%s1 + $0xb8] sm:$0xff]
  %v67 = vld [vmem:[%s1 + $0xc0] sm:$0xff]
  %v68 = vld [vmem:[%s1 + $0xc8] sm:$0xff]
  %v69 = vld [vmem:[%s1 + $0xd0] sm:$0xff]
  %v70 = vld [vmem:[%s1 + $0xd8] sm:$0xff]
  %v71 = vld [vmem:[%s1 + $0xe0] sm:$0xff]
  %v72 = vld [vmem:[%s1 + $0xe8] sm:$0xff]
  %v73 = vld [vmem:[%s1 + $0xf0] sm:$0xff]
  %v74 = vld [vmem:[%s1 + $0xf8] sm:$0xff]
  %v75 = vld [vmem:[%s1 + $0x100] sm:$0xff]
  %v76 = vld [vmem:[%s1 + $0x108] sm:$0xff]
  %v77 = vld [vmem:[%s1 + $0x110] sm:$0xff]
  %v78 = vld [vmem:[%s1 + $0x118] sm:$0xff]
  %v79 = vld [vmem:[%s1 + $0x120] sm:$0xff]
  %v80 = vld [vmem:[%s1 + $0x128] sm:$0xff]
  %v81 = vld [vmem:[%s1 + $0x130] sm:$0xff]
  %v82 = vld [vmem:[%s1 + $0x138] sm:$0xff]
  %v83 = vld [vmem:[%s1 + $0x140] sm:$0xff]
  %v84 = vld [vmem:[%s1 + $0x148] sm:$0xff]
  %v85 = vld [vmem:[%s1 + $0x150] sm:$0xff]
  %v86 = vld [vmem:[%s1 + $0x158] sm:$0xff]
  %v87 = vld [vmem:[%s1 + $0x160] sm:$0xff]
  %v88 = vld [vmem:[%s1 + $0x168] sm:$0xff]
  %v89 = vld [vmem:[%s1 + $0x170] sm:$0xff]
  %v90 = vld [vmem:[%s1 + $0x178] sm:$0xff]
  %v91 = vld [vmem:[%s1 + $0x180] sm:$0xff]
  %v92 = vld [vmem:[%s1 + $0x188] sm:$0xff]
  %v93 = vld [vmem:[%s1 + $0x190] sm:$0xff]
  %v94 = vld [vmem:[%s1 + $0x198] sm:$0xff]
  %v95 = vld [vmem:[%s1 + $0x1a0] sm:$0xff]
  %v96 = vld [vmem:[%s1 + $0x1a8] sm:$0xff]
  %v97 = vld [vmem:[%s1 + $0x1b0] sm:$0xff]
  %v98 = vld [vmem:[%s1 + $0x1b8] sm:$0xff]
  %v99 = vld [vmem:[%s1 + $0x1c0] sm:$0xff]
  %v100 = vld [vmem:[%s1 + $0x1c8] sm:$0xff]
  %v101 = vld [vmem:[%s1 + $0x1d0] sm:$0xff]
  %v102 = vld [vmem:[%s1 + $0x1d8] sm:$0xff]
  %v103 = vld [vmem:[%s1 + $0x1e0] sm:$0xff]
  %v104 = vld [vmem:[%s1 + $0x1e8] sm:$0xff]
  %v105 = vld [vmem:[%s1 + $0x1f0] sm:$0xff]
  %v106 = vld [vmem:[%s1 + $0x1f8] sm:$0xff]
  %v107 = vld [vmem:[%s1 + $0x200] sm:$0xff]
  %v108 = vld [vmem:[%s1 + $0x208] sm:$0xff]
  %v109 = vld [vmem:[%s1 + $0x210] sm:$0xff]
  %v110 = vld [vmem:[%s1 + $0x218] sm:$0xff]
  %v111 = vld [vmem:[%s1 + $0x220] sm:$0xff]
  %v112 = vld [vmem:[%s1 + $0x228] sm:$0xff]
  %v113 = vld [vmem:[%s1 + $0x230] sm:$0xff]
  %v114 = vld [vmem:[%s1 + $0x238] sm:$0xff]
  %v115 = vld [vmem:[%s1 + $0x240] sm:$0xff]
  %v116 = vld [vmem:[%s1 + $0x248] sm:$0xff]
  %v117 = vld [vmem:[%s1 + $0x250] sm:$0xff]
  %v118 = vld [vmem:[%s1 + $0x258] sm:$0xff]
  %v119 = vld [vmem:[%s1 + $0x260] sm:$0xff]
  %v120 = vld [vmem:[%s1 + $0x268] sm:$0xff]
  %v121 = vld [vmem:[%s1 + $0x270] sm:$0xff]
  %v122 = vld [vmem:[%s1 + $0x278] sm:$0xff]
  %v123 = vld [vmem:[%s1 + $0x280] sm:$0xff]
  %v124 = vld [vmem:[%s1 + $0x288] sm:$0xff]
  %v125 = vld [vmem:[%s1 + $0x290] sm:$0xff]
  %v126 = vld [vmem:[%s1 + $0x298] sm:$0xff]
  %v127 = vld [vmem:[%s1 + $0x2a0] sm:$0xff]
  %v128 = vld [vmem:[%s1 + $0x2a8] sm:$0xff]
  %v129 = vld [vmem:[%s1 + $0x2b0] sm:$0xff]
  %v130 = vld [vmem:[%s1 + $0x2b8] sm:$0xff]
  %v131 = vld [vmem:[%s1 + $0x2c0] sm:$0xff]
  %v132 = vld [vmem:[%s1 + $0x2c8] sm:$0xff]
  %v133 = vld [vmem:[%s1 + $0x2d0] sm:$0xff]
  %v134 = vld [vmem:[%s1 + $0x2d8] sm:$0xff]
  %v135 = vld [vmem:[%s1 + $0x2e0] sm:$0xff]
  %v136 = vld [vmem:[%s1 + $0x2e8] sm:$0xff]
  %v137 = vld [vmem:[%s1 + $0x2f0] sm:$0xff]
  %v138 = vld [vmem:[%s1 + $0x2f8] sm:$0xff]
  %v139 = vld [vmem:[%s1 + $0x300] sm:$0xff]
  %v140 = vld [vmem:[%s1 + $0x308] sm:$0xff]
  %v141 = vld [vmem:[%s1 + $0x310] sm:$0xff]
  %v142 = vld [vmem:[%s1 + $0x318] sm:$0xff]
  %v143 = vld [vmem:[%s1 + $0x320] sm:$0xff]
  %v144 = vld [vmem:[%s1 + $0x328] sm:$0xff]
  %v145 = vld [vmem:[%s1 + $0x330] sm:$0xff]
  %v146 = vld [vmem:[%s1 + $0x338] sm:$0xff]
  %v147 = vld [vmem:[%s1 + $0x340] sm:$0xff]
  %v148 = vld [vmem:[%s1 + $0x348] sm:$0xff]
  %v149 = vld [vmem:[%s1 + $0x350] sm:$0xff]
  %v150 = vld [vmem:[%s1 + $0x358] sm:$0xff]
  %v151 = vld [vmem:[%s1 + $0x360] sm:$0xff]
  %v152 = vld [vmem:[%s1 + $0x368] sm:$0xff]
  %v153 = vld [vmem:[%s1 + $0x370] sm:$0xff]
  %v154 = vld [vmem:[%s1 + $0x378] sm:$0xff]
  %v155 = vld [vmem:[%s1 + $0x380] sm:$0xff]
  %v156 = vld [vmem:[%s1 + $0x388] sm:$0xff]
  %v157 = vld [vmem:[%s1 + $0x390] sm:$0xff]
  %v158 = vld [vmem:[%s1 + $0x398] sm:$0xff]
  %v159 = vld [vmem:[%s1 + $0x3a0] sm:$0xff]
  %v160 = vld [vmem:[%s1 + $0x3a8] sm:$0xff]
  %v161 = vld [vmem:[%s1 + $0x3b0] sm:$0xff]
  %v162 = vld [vmem:[%s1 + $0x3b8] sm:$0xff]
  %v163 = vld [vmem:[%s1 + $0x3c0] sm:$0xff]
  %v164 = vld [vmem:[%s1 + $0x3c8] sm:$0xff]
  %v165 = vld [vmem:[%s1 + $0x3d0] sm:$0xff]
  %v166 = vld [vmem:[%s1 + $0x3d8] sm:$0xff]
  %v167 = vld [vmem:[%s1 + $0x3e0] sm:$0xff]
  %v168 = vld [vmem:[%s1 + $0x3e8] sm:$0xff]
  %v169 = vld [vmem:[%s1 + $0x3f0] sm:$0xff]
  %v170 = vld [vmem:[%s1 + $0x3f8] sm:$0xff]
  %v171 = vld [vmem:[%s1 + $0x400] sm:$0xff]
  %v172 = vld [vmem:[%s1 + $0x408] sm:$0xff]
  %v173 = vld [vmem:[%s1 + $0x410] sm:$0xff]
  %v174 = vld [vmem:[%s1 + $0x418] sm:$0xff]
  %v175 = vld [vmem:[%s1 + $0x420] sm:$0xff]
  %v176 = vld [vmem:[%s1 + $0x428] sm:$0xff]
  %v177 = vld [vmem:[%s1 + $0x430] sm:$0xff]
  %v178 = vld [vmem:[%s1 + $0x438] sm:$0xff]
  %v179 = vld [vmem:[%s1 + $0x440] sm:$0xff]
  %v180 = vld [vmem:[%s1 + $0x448] sm:$0xff]
  %v181 = vld [vmem:[%s1 + $0x450] sm:$0xff]
  %v182 = vld [vmem:[%s1 + $0x458] sm:$0xff]
  %v183 = vld [vmem:[%s1 + $0x460] sm:$0xff]
  %v184 = vld [vmem:[%s1 + $0x468] sm:$0xff]
  %v185 = vld [vmem:[%s1 + $0x470] sm:$0xff]
  %v186 = vld [vmem:[%s1 + $0x478] sm:$0xff]
  %v187 = vld [vmem:[%s1 + $0x480] sm:$0xff]
  %v188 = vld [vmem:[%s1 + $0x488] sm:$0xff]
  %v189 = vld [vmem:[%s1 + $0x490] sm:$0xff]
  %v190 = vld [vmem:[%s1 + $0x498] sm:$0xff]
  %v191 = vld [vmem:[%s1 + $0x4a0] sm:$0xff]
  %v192 = vld [vmem:[%s1 + $0x4a8] sm:$0xff]
  %v193 = vld [vmem:[%s1 + $0x4b0] sm:$0xff]
  %v194 = vld [vmem:[%s1 + $0x4b8] sm:$0xff]
  %v195 = vld [vmem:[%s1 + $0x4c0] sm:$0xff]
  %v196 = vld [vmem:[%s1 + $0x4c8] sm:$0xff]
  %v197 = vld [vmem:[%s1 + $0x4d0] sm:$0xff]
  %v198 = vld [vmem:[%s1 + $0x4d8] sm:$0xff]
  %v199 = vld [vmem:[%s1 + $0x4e0] sm:$0xff]
  %v200 = vld [vmem:[%s1 + $0x4e8] sm:$0xff]
  %v201 = vld [vmem:[%s1 + $0x4f0] sm:$0xff]
  %v202 = vld [vmem:[%s1 + $0x4f8] sm:$0xff]
  %v203 = vld [vmem:[%s1 + $0x500] sm:$0xff]
  %v204 = vld [vmem:[%s1 + $0x508] sm:$0xff]
  %v205 = vld [vmem:[%s1 + $0x510] sm:$0xff]
  %v206 = vld [vmem:[%s1 + $0x518] sm:$0xff]
  %v207 = vld [vmem:[%s1 + $0x520] sm:$0xff]
  %v208 = vld [vmem:[%s1 + $0x528] sm:$0xff]
  %v209 = vld [vmem:[%s1 + $0x530] sm:$0xff]
  %v210 = vld [vmem:[%s1 + $0x538] sm:$0xff]
  %v211 = vld [vmem:[%s1 + $0x540] sm:$0xff]
  %v212 = vld [vmem:[%s1 + $0x548] sm:$0xff]
  %v213 = vld [vmem:[%s1 + $0x550] sm:$0xff]
  %v214 = vld [vmem:[%s1 + $0x558] sm:$0xff]
  %v215 = vld [vmem:[%s1 + $0x560] sm:$0xff]
  %v216 = vld [vmem:[%s1 + $0x568] sm:$0xff]
  %v217 = vld [vmem:[%s1 + $0x570] sm:$0xff]
  %v218 = vld [vmem:[%s1 + $0x578] sm:$0xff]
  %v219 = vld [vmem:[%s1 + $0x580] sm:$0xff]
  %v220 = vld [vmem:[%s1 + $0x588] sm:$0xff]
  %v221 = vld [vmem:[%s1 + $0x590] sm:$0xff]
  %v222 = vld [vmem:[%s1 + $0x598] sm:$0xff]
  %v223 = vld [vmem:[%s1 + $0x5a0] sm:$0xff]
  %v224 = vld [vmem:[%s1 + $0x5a8] sm:$0xff]
  %v225 = vld [vmem:[%s1 + $0x5b0] sm:$0xff]
  %v226 = vld [vmem:[%s1 + $0x5b8] sm:$0xff]
  %v227 = vld [vmem:[%s1 + $0x5c0] sm:$0xff]
  %v228 = vld [vmem:[%s1 + $0x5c8] sm:$0xff]
  %v229 = vld [vmem:[%s1 + $0x5d0] sm:$0xff]
  %v230 = vld [vmem:[%s1 + $0x5d8] sm:$0xff]
  %v231 = vld [vmem:[%s1 + $0x5e0] sm:$0xff]
  %v232 = vld [vmem:[%s1 + $0x5e8] sm:$0xff]
  %v233 = vld [vmem:[%s1 + $0x5f0] sm:$0xff]
  %v234 = vld [vmem:[%s1 + $0x5f8] sm:$0xff]
  %v235 = vld [vmem:[%s1 + $0x600] sm:$0xff]
  %v236 = vld [vmem:[%s1 + $0x608] sm:$0xff]
  %v237 = vld [vmem:[%s1 + $0x610] sm:$0xff]
  %v238 = vld [vmem:[%s1 + $0x618] sm:$0xff]
  %v239 = vld [vmem:[%s2] sm:$0xf]
  %v241 = vlaneseq
  %v242 = vshrl.u32 %v241, 7
  %v243 = vsub.s32 0, %v242
  %v244 = vrot.slane %v239, %v243
  %v245 = vlaneseq
  %v246 = vshrl.u32 %v245, 7
  %v247 = vsub.s32 1, %v246
  %v248 = vrot.slane %v239, %v247
  %v249 = vlaneseq
  %v250 = vshrl.u32 %v249, 7
  %v251 = vsub.s32 2, %v250
  %v252 = vrot.slane %v239, %v251
  %v253 = vlaneseq
  %v254 = vshrl.u32 %v253, 7
  %v255 = vsub.s32 3, %v254
  %v256 = vrot.slane %v239, %v255
  %v277 = vunpack.c.l.b16 %v27
  %v278 = vunpack.c.h.b16 %v27
  %v279 = vunpack.c.l.b16 %v28
  %v280 = vunpack.c.h.b16 %v28
  %v281 = vunpack.c.l.b16 %v29
  %v282 = vunpack.c.h.b16 %v29
  %v283 = vunpack.c.l.b16 %v30
  %v284 = vunpack.c.l.b16 %v31
  %v285 = vunpack.c.h.b16 %v31
  %v286 = vunpack.c.l.b16 %v32
  %v287 = vunpack.c.h.b16 %v32
  %v288 = vunpack.c.l.b16 %v33
  %v289 = vunpack.c.h.b16 %v33
  %v290 = vunpack.c.l.b16 %v34
  %v291 = vunpack.c.l.b16 %v35
  %v292 = vunpack.c.h.b16 %v35
  %v293 = vunpack.c.l.b16 %v36
  %v294 = vunpack.c.h.b16 %v36
  %v295 = vunpack.c.l.b16 %v37
  %v296 = vunpack.c.h.b16 %v37
  %v297 = vunpack.c.l.b16 %v38
  %v298 = vunpack.c.l.b16 %v39
  %v299 = vunpack.c.h.b16 %v39
  %v300 = vunpack.c.l.b16 %v40
  %v301 = vunpack.c.h.b16 %v40
  %v302 = vunpack.c.l.b16 %v41
  %v303 = vunpack.c.h.b16 %v41
  %v304 = vunpack.c.l.b16 %v42
  %v305 = vpack.c.b16 %v284, %v277
  %v306 = vpack.c.b16 %v285, %v278
  %v307 = vpack.c.b16 %v286, %v279
  %v308 = vpack.c.b16 %v287, %v280
  %v309 = vpack.c.b16 %v288, %v281
  %v310 = vpack.c.b16 %v289, %v282
  %v311 = vpack.c.b16 %v290, %v283
  %v312 = vpack.c.b16 %v298, %v291
  %v313 = vpack.c.b16 %v299, %v292
  %v314 = vpack.c.b16 %v300, %v293
  %v315 = vpack.c.b16 %v301, %v294
  %v316 = vpack.c.b16 %v302, %v295
  %v317 = vpack.c.b16 %v303, %v296
  %v318 = vpack.c.b16 %v304, %v297
  %v527 = vunpack.c.l.b16 %v43
  %v528 = vunpack.c.h.b16 %v43
  %v529 = vunpack.c.l.b16 %v44
  %v530 = vunpack.c.h.b16 %v44
  %v531 = vunpack.c.l.b16 %v45
  %v532 = vunpack.c.h.b16 %v45
  %v533 = vunpack.c.l.b16 %v46
  %v534 = vunpack.c.h.b16 %v46
  %v535 = vunpack.c.l.b16 %v47
  %v536 = vunpack.c.h.b16 %v47
  %v537 = vunpack.c.l.b16 %v48
  %v538 = vunpack.c.h.b16 %v48
  %v539 = vunpack.c.l.b16 %v49
  %v540 = vunpack.c.h.b16 %v49
  %v541 = vunpack.c.l.b16 %v50
  %v542 = vunpack.c.h.b16 %v50
  %v543 = vunpack.c.l.b16 %v51
  %v544 = vunpack.c.h.b16 %v51
  %v545 = vunpack.c.l.b16 %v52
  %v546 = vunpack.c.h.b16 %v52
  %v547 = vunpack.c.l.b16 %v53
  %v548 = vunpack.c.h.b16 %v53
  %v549 = vunpack.c.l.b16 %v54
  %v550 = vunpack.c.h.b16 %v54
  %v551 = vunpack.c.l.b16 %v55
  %v552 = vunpack.c.h.b16 %v55
  %v553 = vunpack.c.l.b16 %v56
  %v554 = vunpack.c.h.b16 %v56
  %v555 = vunpack.c.l.b16 %v57
  %v556 = vunpack.c.h.b16 %v57
  %v557 = vunpack.c.l.b16 %v58
  %v558 = vunpack.c.h.b16 %v58
  %v559 = vunpack.c.l.b16 %v59
  %v560 = vunpack.c.h.b16 %v59
  %v561 = vunpack.c.l.b16 %v60
  %v562 = vunpack.c.h.b16 %v60
  %v563 = vunpack.c.l.b16 %v61
  %v564 = vunpack.c.h.b16 %v61
  %v565 = vunpack.c.l.b16 %v62
  %v566 = vunpack.c.h.b16 %v62
  %v567 = vunpack.c.l.b16 %v63
  %v568 = vunpack.c.h.b16 %v63
  %v569 = vunpack.c.l.b16 %v64
  %v570 = vunpack.c.h.b16 %v64
  %v571 = vunpack.c.l.b16 %v65
  %v572 = vunpack.c.h.b16 %v65
  %v573 = vunpack.c.l.b16 %v66
  %v574 = vunpack.c.h.b16 %v66
  %v575 = vunpack.c.l.b16 %v67
  %v576 = vunpack.c.h.b16 %v67
  %v577 = vunpack.c.l.b16 %v68
  %v578 = vunpack.c.h.b16 %v68
  %v579 = vunpack.c.l.b16 %v69
  %v580 = vunpack.c.h.b16 %v69
  %v581 = vunpack.c.l.b16 %v70
  %v582 = vunpack.c.h.b16 %v70
  %v583 = vunpack.c.l.b16 %v71
  %v584 = vunpack.c.h.b16 %v71
  %v585 = vunpack.c.l.b16 %v72
  %v586 = vunpack.c.h.b16 %v72
  %v587 = vunpack.c.l.b16 %v73
  %v588 = vunpack.c.h.b16 %v73
  %v589 = vunpack.c.l.b16 %v74
  %v590 = vunpack.c.h.b16 %v74
  %v591 = vunpack.c.l.b16 %v75
  %v592 = vunpack.c.h.b16 %v75
  %v593 = vunpack.c.l.b16 %v76
  %v594 = vunpack.c.h.b16 %v76
  %v595 = vunpack.c.l.b16 %v77
  %v596 = vunpack.c.h.b16 %v77
  %v597 = vunpack.c.l.b16 %v78
  %v598 = vunpack.c.h.b16 %v78
  %v599 = vunpack.c.l.b16 %v79
  %v600 = vunpack.c.h.b16 %v79
  %v601 = vunpack.c.l.b16 %v80
  %v602 = vunpack.c.h.b16 %v80
  %v603 = vunpack.c.l.b16 %v81
  %v604 = vunpack.c.h.b16 %v81
  %v605 = vunpack.c.l.b16 %v82
  %v606 = vunpack.c.h.b16 %v82
  %v607 = vunpack.c.l.b16 %v83
  %v608 = vunpack.c.h.b16 %v83
  %v609 = vunpack.c.l.b16 %v84
  %v610 = vunpack.c.h.b16 %v84
  %v611 = vunpack.c.l.b16 %v85
  %v612 = vunpack.c.h.b16 %v85
  %v613 = vunpack.c.l.b16 %v86
  %v614 = vunpack.c.h.b16 %v86
  %v615 = vunpack.c.l.b16 %v87
  %v616 = vunpack.c.h.b16 %v87
  %v617 = vunpack.c.l.b16 %v88
  %v618 = vunpack.c.h.b16 %v88
  %v619 = vunpack.c.l.b16 %v89
  %v620 = vunpack.c.h.b16 %v89
  %v621 = vunpack.c.l.b16 %v90
  %v622 = vunpack.c.h.b16 %v90
  %v623 = vunpack.c.l.b16 %v91
  %v624 = vunpack.c.h.b16 %v91
  %v625 = vunpack.c.l.b16 %v92
  %v626 = vunpack.c.h.b16 %v92
  %v627 = vunpack.c.l.b16 %v93
  %v628 = vunpack.c.h.b16 %v93
  %v629 = vunpack.c.l.b16 %v94
  %v630 = vunpack.c.h.b16 %v94
  %v631 = vunpack.c.l.b16 %v95
  %v632 = vunpack.c.h.b16 %v95
  %v633 = vunpack.c.l.b16 %v96
  %v634 = vunpack.c.h.b16 %v96
  %v635 = vunpack.c.l.b16 %v97
  %v636 = vunpack.c.h.b16 %v97
  %v637 = vunpack.c.l.b16 %v98
  %v638 = vunpack.c.h.b16 %v98
  %v639 = vunpack.c.l.b16 %v99
  %v640 = vunpack.c.h.b16 %v99
  %v641 = vunpack.c.l.b16 %v100
  %v642 = vunpack.c.h.b16 %v100
  %v643 = vunpack.c.l.b16 %v101
  %v644 = vunpack.c.h.b16 %v101
  %v645 = vunpack.c.l.b16 %v102
  %v646 = vunpack.c.h.b16 %v102
  %v647 = vunpack.c.l.b16 %v103
  %v648 = vunpack.c.h.b16 %v103
  %v649 = vunpack.c.l.b16 %v104
  %v650 = vunpack.c.h.b16 %v104
  %v651 = vunpack.c.l.b16 %v105
  %v652 = vunpack.c.h.b16 %v105
  %v653 = vunpack.c.l.b16 %v106
  %v654 = vunpack.c.h.b16 %v106
  %v655 = vunpack.c.l.b16 %v107
  %v656 = vunpack.c.h.b16 %v107
  %v657 = vunpack.c.l.b16 %v108
  %v658 = vunpack.c.h.b16 %v108
  %v659 = vunpack.c.l.b16 %v109
  %v660 = vunpack.c.h.b16 %v109
  %v661 = vunpack.c.l.b16 %v110
  %v662 = vunpack.c.h.b16 %v110
  %v663 = vunpack.c.l.b16 %v111
  %v664 = vunpack.c.h.b16 %v111
  %v665 = vunpack.c.l.b16 %v112
  %v666 = vunpack.c.h.b16 %v112
  %v667 = vunpack.c.l.b16 %v113
  %v668 = vunpack.c.h.b16 %v113
  %v669 = vunpack.c.l.b16 %v114
  %v670 = vunpack.c.h.b16 %v114
  %v671 = vunpack.c.l.b16 %v115
  %v672 = vunpack.c.h.b16 %v115
  %v673 = vunpack.c.l.b16 %v116
  %v674 = vunpack.c.h.b16 %v116
  %v675 = vunpack.c.l.b16 %v117
  %v676 = vunpack.c.h.b16 %v117
  %v677 = vunpack.c.l.b16 %v118
  %v678 = vunpack.c.h.b16 %v118
  %v679 = vunpack.c.l.b16 %v119
  %v680 = vunpack.c.h.b16 %v119
  %v681 = vunpack.c.l.b16 %v120
  %v682 = vunpack.c.h.b16 %v120
  %v683 = vunpack.c.l.b16 %v121
  %v684 = vunpack.c.h.b16 %v121
  %v685 = vunpack.c.l.b16 %v122
  %v686 = vunpack.c.h.b16 %v122
  %v687 = vunpack.c.l.b16 %v123
  %v688 = vunpack.c.h.b16 %v123
  %v689 = vunpack.c.l.b16 %v124
  %v690 = vunpack.c.h.b16 %v124
  %v691 = vunpack.c.l.b16 %v125
  %v692 = vunpack.c.h.b16 %v125
  %v693 = vunpack.c.l.b16 %v126
  %v694 = vunpack.c.h.b16 %v126
  %v695 = vunpack.c.l.b16 %v127
  %v696 = vunpack.c.h.b16 %v127
  %v697 = vunpack.c.l.b16 %v128
  %v698 = vunpack.c.h.b16 %v128
  %v699 = vunpack.c.l.b16 %v129
  %v700 = vunpack.c.h.b16 %v129
  %v701 = vunpack.c.l.b16 %v130
  %v702 = vunpack.c.h.b16 %v130
  %v703 = vunpack.c.l.b16 %v131
  %v704 = vunpack.c.h.b16 %v131
  %v705 = vunpack.c.l.b16 %v132
  %v706 = vunpack.c.h.b16 %v132
  %v707 = vunpack.c.l.b16 %v133
  %v708 = vunpack.c.h.b16 %v133
  %v709 = vunpack.c.l.b16 %v134
  %v710 = vunpack.c.h.b16 %v134
  %v711 = vunpack.c.l.b16 %v135
  %v712 = vunpack.c.h.b16 %v135
  %v713 = vunpack.c.l.b16 %v136
  %v714 = vunpack.c.h.b16 %v136
  %v715 = vunpack.c.l.b16 %v137
  %v716 = vunpack.c.h.b16 %v137
  %v717 = vunpack.c.l.b16 %v138
  %v718 = vunpack.c.h.b16 %v138
  %v719 = vunpack.c.l.b16 %v139
  %v720 = vunpack.c.h.b16 %v139
  %v721 = vunpack.c.l.b16 %v140
  %v722 = vunpack.c.h.b16 %v140
  %v723 = vunpack.c.l.b16 %v141
  %v724 = vunpack.c.h.b16 %v141
  %v725 = vunpack.c.l.b16 %v142
  %v726 = vunpack.c.h.b16 %v142
  %v727 = vunpack.c.l.b16 %v143
  %v728 = vunpack.c.h.b16 %v143
  %v729 = vunpack.c.l.b16 %v144
  %v730 = vunpack.c.h.b16 %v144
  %v731 = vunpack.c.l.b16 %v145
  %v732 = vunpack.c.h.b16 %v145
  %v733 = vunpack.c.l.b16 %v146
  %v734 = vunpack.c.h.b16 %v146
  %v735 = vunpack.c.l.b16 %v147
  %v736 = vunpack.c.h.b16 %v147
  %v737 = vunpack.c.l.b16 %v148
  %v738 = vunpack.c.h.b16 %v148
  %v739 = vunpack.c.l.b16 %v149
  %v740 = vunpack.c.h.b16 %v149
  %v741 = vunpack.c.l.b16 %v150
  %v742 = vunpack.c.h.b16 %v150
  %v743 = vunpack.c.l.b16 %v151
  %v744 = vunpack.c.h.b16 %v151
  %v745 = vunpack.c.l.b16 %v152
  %v746 = vunpack.c.h.b16 %v152
  %v747 = vunpack.c.l.b16 %v153
  %v748 = vunpack.c.h.b16 %v153
  %v749 = vunpack.c.l.b16 %v154
  %v750 = vunpack.c.h.b16 %v154
  %v751 = vunpack.c.l.b16 %v155
  %v752 = vunpack.c.h.b16 %v155
  %v753 = vunpack.c.l.b16 %v156
  %v754 = vunpack.c.h.b16 %v156
  %v755 = vunpack.c.l.b16 %v157
  %v756 = vunpack.c.h.b16 %v157
  %v757 = vunpack.c.l.b16 %v158
  %v758 = vunpack.c.h.b16 %v158
  %v759 = vunpack.c.l.b16 %v159
  %v760 = vunpack.c.h.b16 %v159
  %v761 = vunpack.c.l.b16 %v160
  %v762 = vunpack.c.h.b16 %v160
  %v763 = vunpack.c.l.b16 %v161
  %v764 = vunpack.c.h.b16 %v161
  %v765 = vunpack.c.l.b16 %v162
  %v766 = vunpack.c.h.b16 %v162
  %v767 = vunpack.c.l.b16 %v163
  %v768 = vunpack.c.h.b16 %v163
  %v769 = vunpack.c.l.b16 %v164
  %v770 = vunpack.c.h.b16 %v164
  %v771 = vunpack.c.l.b16 %v165
  %v772 = vunpack.c.h.b16 %v165
  %v773 = vunpack.c.l.b16 %v166
  %v774 = vunpack.c.h.b16 %v166
  %v775 = vunpack.c.l.b16 %v167
  %v776 = vunpack.c.h.b16 %v167
  %v777 = vunpack.c.l.b16 %v168
  %v778 = vunpack.c.h.b16 %v168
  %v779 = vunpack.c.l.b16 %v169
  %v780 = vunpack.c.h.b16 %v169
  %v781 = vunpack.c.l.b16 %v170
  %v782 = vunpack.c.h.b16 %v170
  %v783 = vunpack.c.l.b16 %v171
  %v784 = vunpack.c.h.b16 %v171
  %v785 = vunpack.c.l.b16 %v172
  %v786 = vunpack.c.h.b16 %v172
  %v787 = vunpack.c.l.b16 %v173
  %v788 = vunpack.c.h.b16 %v173
  %v789 = vunpack.c.l.b16 %v174
  %v790 = vunpack.c.h.b16 %v174
  %v791 = vunpack.c.l.b16 %v175
  %v792 = vunpack.c.h.b16 %v175
  %v793 = vunpack.c.l.b16 %v176
  %v794 = vunpack.c.h.b16 %v176
  %v795 = vunpack.c.l.b16 %v177
  %v796 = vunpack.c.h.b16 %v177
  %v797 = vunpack.c.l.b16 %v178
  %v798 = vunpack.c.h.b16 %v178
  %v799 = vunpack.c.l.b16 %v179
  %v800 = vunpack.c.h.b16 %v179
  %v801 = vunpack.c.l.b16 %v180
  %v802 = vunpack.c.h.b16 %v180
  %v803 = vunpack.c.l.b16 %v181
  %v804 = vunpack.c.h.b16 %v181
  %v805 = vunpack.c.l.b16 %v182
  %v806 = vunpack.c.h.b16 %v182
  %v807 = vunpack.c.l.b16 %v183
  %v808 = vunpack.c.h.b16 %v183
  %v809 = vunpack.c.l.b16 %v184
  %v810 = vunpack.c.h.b16 %v184
  %v811 = vunpack.c.l.b16 %v185
  %v812 = vunpack.c.h.b16 %v185
  %v813 = vunpack.c.l.b16 %v186
  %v814 = vunpack.c.h.b16 %v186
  %v815 = vunpack.c.l.b16 %v187
  %v816 = vunpack.c.h.b16 %v187
  %v817 = vunpack.c.l.b16 %v188
  %v818 = vunpack.c.h.b16 %v188
  %v819 = vunpack.c.l.b16 %v189
  %v820 = vunpack.c.h.b16 %v189
  %v821 = vunpack.c.l.b16 %v190
  %v822 = vunpack.c.h.b16 %v190
  %v823 = vunpack.c.l.b16 %v191
  %v824 = vunpack.c.h.b16 %v191
  %v825 = vunpack.c.l.b16 %v192
  %v826 = vunpack.c.h.b16 %v192
  %v827 = vunpack.c.l.b16 %v193
  %v828 = vunpack.c.h.b16 %v193
  %v829 = vunpack.c.l.b16 %v194
  %v830 = vunpack.c.h.b16 %v194
  %v831 = vunpack.c.l.b16 %v195
  %v832 = vunpack.c.h.b16 %v195
  %v833 = vunpack.c.l.b16 %v196
  %v834 = vunpack.c.h.b16 %v196
  %v835 = vunpack.c.l.b16 %v197
  %v836 = vunpack.c.h.b16 %v197
  %v837 = vunpack.c.l.b16 %v198
  %v838 = vunpack.c.h.b16 %v198
  %v839 = vunpack.c.l.b16 %v199
  %v840 = vunpack.c.h.b16 %v199
  %v841 = vunpack.c.l.b16 %v200
  %v842 = vunpack.c.h.b16 %v200
  %v843 = vunpack.c.l.b16 %v201
  %v844 = vunpack.c.h.b16 %v201
  %v845 = vunpack.c.l.b16 %v202
  %v846 = vunpack.c.h.b16 %v202
  %v847 = vunpack.c.l.b16 %v203
  %v848 = vunpack.c.h.b16 %v203
  %v849 = vunpack.c.l.b16 %v204
  %v850 = vunpack.c.h.b16 %v204
  %v851 = vunpack.c.l.b16 %v205
  %v852 = vunpack.c.h.b16 %v205
  %v853 = vunpack.c.l.b16 %v206
  %v854 = vunpack.c.h.b16 %v206
  %v855 = vunpack.c.l.b16 %v207
  %v856 = vunpack.c.h.b16 %v207
  %v857 = vunpack.c.l.b16 %v208
  %v858 = vunpack.c.h.b16 %v208
  %v859 = vunpack.c.l.b16 %v209
  %v860 = vunpack.c.h.b16 %v209
  %v861 = vunpack.c.l.b16 %v210
  %v862 = vunpack.c.h.b16 %v210
  %v863 = vunpack.c.l.b16 %v211
  %v864 = vunpack.c.h.b16 %v211
  %v865 = vunpack.c.l.b16 %v212
  %v866 = vunpack.c.h.b16 %v212
  %v867 = vunpack.c.l.b16 %v213
  %v868 = vunpack.c.h.b16 %v213
  %v869 = vunpack.c.l.b16 %v214
  %v870 = vunpack.c.h.b16 %v214
  %v871 = vunpack.c.l.b16 %v215
  %v872 = vunpack.c.h.b16 %v215
  %v873 = vunpack.c.l.b16 %v216
  %v874 = vunpack.c.h.b16 %v216
  %v875 = vunpack.c.l.b16 %v217
  %v876 = vunpack.c.h.b16 %v217
  %v877 = vunpack.c.l.b16 %v218
  %v878 = vunpack.c.h.b16 %v218
  %v879 = vunpack.c.l.b16 %v219
  %v880 = vunpack.c.h.b16 %v219
  %v881 = vunpack.c.l.b16 %v220
  %v882 = vunpack.c.h.b16 %v220
  %v883 = vunpack.c.l.b16 %v221
  %v884 = vunpack.c.h.b16 %v221
  %v885 = vunpack.c.l.b16 %v222
  %v886 = vunpack.c.h.b16 %v222
  %v887 = vunpack.c.l.b16 %v223
  %v888 = vunpack.c.h.b16 %v223
  %v889 = vunpack.c.l.b16 %v224
  %v890 = vunpack.c.h.b16 %v224
  %v891 = vunpack.c.l.b16 %v225
  %v892 = vunpack.c.h.b16 %v225
  %v893 = vunpack.c.l.b16 %v226
  %v894 = vunpack.c.h.b16 %v226
  %v895 = vunpack.c.l.b16 %v227
  %v896 = vunpack.c.h.b16 %v227
  %v897 = vunpack.c.l.b16 %v228
  %v898 = vunpack.c.h.b16 %v228
  %v899 = vunpack.c.l.b16 %v229
  %v900 = vunpack.c.h.b16 %v229
  %v901 = vunpack.c.l.b16 %v230
  %v902 = vunpack.c.h.b16 %v230
  %v903 = vunpack.c.l.b16 %v231
  %v904 = vunpack.c.h.b16 %v231
  %v905 = vunpack.c.l.b16 %v232
  %v906 = vunpack.c.h.b16 %v232
  %v907 = vunpack.c.l.b16 %v233
  %v908 = vunpack.c.h.b16 %v233
  %v909 = vunpack.c.l.b16 %v234
  %v910 = vunpack.c.h.b16 %v234
  %v911 = vunpack.c.l.b16 %v235
  %v912 = vunpack.c.h.b16 %v235
  %v913 = vunpack.c.l.b16 %v236
  %v914 = vunpack.c.h.b16 %v236
  %v915 = vunpack.c.l.b16 %v237
  %v916 = vunpack.c.h.b16 %v237
  %v917 = vunpack.c.l.b16 %v238
  %v918 = vunpack.c.h.b16 %v238
  %v919 = vpack.c.b16 %v531, %v527
  %v920 = vpack.c.b16 %v532, %v528
  %v921 = vpack.c.b16 %v533, %v529
  %v922 = vpack.c.b16 %v534, %v530
  %v923 = vpack.c.b16 %v539, %v535
  %v924 = vpack.c.b16 %v540, %v536
  %v925 = vpack.c.b16 %v541, %v537
  %v926 = vpack.c.b16 %v542, %v538
  %v927 = vpack.c.b16 %v547, %v543
  %v928 = vpack.c.b16 %v548, %v544
  %v929 = vpack.c.b16 %v549, %v545
  %v930 = vpack.c.b16 %v550, %v546
  %v931 = vpack.c.b16 %v555, %v551
  %v932 = vpack.c.b16 %v556, %v552
  %v933 = vpack.c.b16 %v557, %v553
  %v934 = vpack.c.b16 %v558, %v554
  %v935 = vpack.c.b16 %v563, %v559
  %v936 = vpack.c.b16 %v564, %v560
  %v937 = vpack.c.b16 %v565, %v561
  %v938 = vpack.c.b16 %v566, %v562
  %v939 = vpack.c.b16 %v571, %v567
  %v940 = vpack.c.b16 %v572, %v568
  %v941 = vpack.c.b16 %v573, %v569
  %v942 = vpack.c.b16 %v574, %v570
  %v943 = vpack.c.b16 %v579, %v575
  %v944 = vpack.c.b16 %v580, %v576
  %v945 = vpack.c.b16 %v581, %v577
  %v946 = vpack.c.b16 %v582, %v578
  %v947 = vpack.c.b16 %v587, %v583
  %v948 = vpack.c.b16 %v588, %v584
  %v949 = vpack.c.b16 %v589, %v585
  %v950 = vpack.c.b16 %v590, %v586
  %v951 = vpack.c.b16 %v595, %v591
  %v952 = vpack.c.b16 %v596, %v592
  %v953 = vpack.c.b16 %v597, %v593
  %v954 = vpack.c.b16 %v598, %v594
  %v955 = vpack.c.b16 %v603, %v599
  %v956 = vpack.c.b16 %v604, %v600
  %v957 = vpack.c.b16 %v605, %v601
  %v958 = vpack.c.b16 %v606, %v602
  %v959 = vpack.c.b16 %v611, %v607
  %v960 = vpack.c.b16 %v612, %v608
  %v961 = vpack.c.b16 %v613, %v609
  %v962 = vpack.c.b16 %v614, %v610
  %v963 = vpack.c.b16 %v619, %v615
  %v964 = vpack.c.b16 %v620, %v616
  %v965 = vpack.c.b16 %v621, %v617
  %v966 = vpack.c.b16 %v622, %v618
  %v967 = vpack.c.b16 %v627, %v623
  %v968 = vpack.c.b16 %v628, %v624
  %v969 = vpack.c.b16 %v629, %v625
  %v970 = vpack.c.b16 %v630, %v626
  %v971 = vpack.c.b16 %v635, %v631
  %v972 = vpack.c.b16 %v636, %v632
  %v973 = vpack.c.b16 %v637, %v633
  %v974 = vpack.c.b16 %v638, %v634
  %v975 = vpack.c.b16 %v643, %v639
  %v976 = vpack.c.b16 %v644, %v640
  %v977 = vpack.c.b16 %v645, %v641
  %v978 = vpack.c.b16 %v646, %v642
  %v979 = vpack.c.b16 %v651, %v647
  %v980 = vpack.c.b16 %v652, %v648
  %v981 = vpack.c.b16 %v653, %v649
  %v982 = vpack.c.b16 %v654, %v650
  %v983 = vpack.c.b16 %v659, %v655
  %v984 = vpack.c.b16 %v660, %v656
  %v985 = vpack.c.b16 %v661, %v657
  %v986 = vpack.c.b16 %v662, %v658
  %v987 = vpack.c.b16 %v667, %v663
  %v988 = vpack.c.b16 %v668, %v664
  %v989 = vpack.c.b16 %v669, %v665
  %v990 = vpack.c.b16 %v670, %v666
  %v991 = vpack.c.b16 %v675, %v671
  %v992 = vpack.c.b16 %v676, %v672
  %v993 = vpack.c.b16 %v677, %v673
  %v994 = vpack.c.b16 %v678, %v674
  %v995 = vpack.c.b16 %v683, %v679
  %v996 = vpack.c.b16 %v684, %v680
  %v997 = vpack.c.b16 %v685, %v681
  %v998 = vpack.c.b16 %v686, %v682
  %v999 = vpack.c.b16 %v691, %v687
  %v1000 = vpack.c.b16 %v692, %v688
  %v1001 = vpack.c.b16 %v693, %v689
  %v1002 = vpack.c.b16 %v694, %v690
  %v1003 = vpack.c.b16 %v699, %v695
  %v1004 = vpack.c.b16 %v700, %v696
  %v1005 = vpack.c.b16 %v701, %v697
  %v1006 = vpack.c.b16 %v702, %v698
  %v1007 = vpack.c.b16 %v707, %v703
  %v1008 = vpack.c.b16 %v708, %v704
  %v1009 = vpack.c.b16 %v709, %v705
  %v1010 = vpack.c.b16 %v710, %v706
  %v1011 = vpack.c.b16 %v715, %v711
  %v1012 = vpack.c.b16 %v716, %v712
  %v1013 = vpack.c.b16 %v717, %v713
  %v1014 = vpack.c.b16 %v718, %v714
  %v1015 = vpack.c.b16 %v723, %v719
  %v1016 = vpack.c.b16 %v724, %v720
  %v1017 = vpack.c.b16 %v725, %v721
  %v1018 = vpack.c.b16 %v726, %v722
  %v1019 = vpack.c.b16 %v731, %v727
  %v1020 = vpack.c.b16 %v732, %v728
  %v1021 = vpack.c.b16 %v733, %v729
  %v1022 = vpack.c.b16 %v734, %v730
  %v1023 = vpack.c.b16 %v739, %v735
  %v1024 = vpack.c.b16 %v740, %v736
  %v1025 = vpack.c.b16 %v741, %v737
  %v1026 = vpack.c.b16 %v742, %v738
  %v1027 = vpack.c.b16 %v747, %v743
  %v1028 = vpack.c.b16 %v748, %v744
  %v1029 = vpack.c.b16 %v749, %v745
  %v1030 = vpack.c.b16 %v750, %v746
  %v1031 = vpack.c.b16 %v755, %v751
  %v1032 = vpack.c.b16 %v756, %v752
  %v1033 = vpack.c.b16 %v757, %v753
  %v1034 = vpack.c.b16 %v758, %v754
  %v1035 = vpack.c.b16 %v763, %v759
  %v1036 = vpack.c.b16 %v764, %v760
  %v1037 = vpack.c.b16 %v765, %v761
  %v1038 = vpack.c.b16 %v766, %v762
  %v1039 = vpack.c.b16 %v771, %v767
  %v1040 = vpack.c.b16 %v772, %v768
  %v1041 = vpack.c.b16 %v773, %v769
  %v1042 = vpack.c.b16 %v774, %v770
  %v1043 = vpack.c.b16 %v779, %v775
  %v1044 = vpack.c.b16 %v780, %v776
  %v1045 = vpack.c.b16 %v781, %v777
  %v1046 = vpack.c.b16 %v782, %v778
  %v1047 = vpack.c.b16 %v787, %v783
  %v1048 = vpack.c.b16 %v788, %v784
  %v1049 = vpack.c.b16 %v789, %v785
  %v1050 = vpack.c.b16 %v790, %v786
  %v1051 = vpack.c.b16 %v795, %v791
  %v1052 = vpack.c.b16 %v796, %v792
  %v1053 = vpack.c.b16 %v797, %v793
  %v1054 = vpack.c.b16 %v798, %v794
  %v1055 = vpack.c.b16 %v803, %v799
  %v1056 = vpack.c.b16 %v804, %v800
  %v1057 = vpack.c.b16 %v805, %v801
  %v1058 = vpack.c.b16 %v806, %v802
  %v1059 = vpack.c.b16 %v811, %v807
  %v1060 = vpack.c.b16 %v812, %v808
  %v1061 = vpack.c.b16 %v813, %v809
  %v1062 = vpack.c.b16 %v814, %v810
  %v1063 = vpack.c.b16 %v819, %v815
  %v1064 = vpack.c.b16 %v820, %v816
  %v1065 = vpack.c.b16 %v821, %v817
  %v1066 = vpack.c.b16 %v822, %v818
  %v1067 = vpack.c.b16 %v827, %v823
  %v1068 = vpack.c.b16 %v828, %v824
  %v1069 = vpack.c.b16 %v829, %v825
  %v1070 = vpack.c.b16 %v830, %v826
  %v1071 = vpack.c.b16 %v835, %v831
  %v1072 = vpack.c.b16 %v836, %v832
  %v1073 = vpack.c.b16 %v837, %v833
  %v1074 = vpack.c.b16 %v838, %v834
  %v1075 = vpack.c.b16 %v843, %v839
  %v1076 = vpack.c.b16 %v844, %v840
  %v1077 = vpack.c.b16 %v845, %v841
  %v1078 = vpack.c.b16 %v846, %v842
  %v1079 = vpack.c.b16 %v851, %v847
  %v1080 = vpack.c.b16 %v852, %v848
  %v1081 = vpack.c.b16 %v853, %v849
  %v1082 = vpack.c.b16 %v854, %v850
  %v1083 = vpack.c.b16 %v859, %v855
  %v1084 = vpack.c.b16 %v860, %v856
  %v1085 = vpack.c.b16 %v861, %v857
  %v1086 = vpack.c.b16 %v862, %v858
  %v1087 = vpack.c.b16 %v867, %v863
  %v1088 = vpack.c.b16 %v868, %v864
  %v1089 = vpack.c.b16 %v869, %v865
  %v1090 = vpack.c.b16 %v870, %v866
  %v1091 = vpack.c.b16 %v875, %v871
  %v1092 = vpack.c.b16 %v876, %v872
  %v1093 = vpack.c.b16 %v877, %v873
  %v1094 = vpack.c.b16 %v878, %v874
  %v1095 = vpack.c.b16 %v883, %v879
  %v1096 = vpack.c.b16 %v884, %v880
  %v1097 = vpack.c.b16 %v885, %v881
  %v1098 = vpack.c.b16 %v886, %v882
  %v1099 = vpack.c.b16 %v891, %v887
  %v1100 = vpack.c.b16 %v892, %v888
  %v1101 = vpack.c.b16 %v893, %v889
  %v1102 = vpack.c.b16 %v894, %v890
  %v1103 = vpack.c.b16 %v899, %v895
  %v1104 = vpack.c.b16 %v900, %v896
  %v1105 = vpack.c.b16 %v901, %v897
  %v1106 = vpack.c.b16 %v902, %v898
  %v1107 = vpack.c.b16 %v907, %v903
  %v1108 = vpack.c.b16 %v908, %v904
  %v1109 = vpack.c.b16 %v909, %v905
  %v1110 = vpack.c.b16 %v910, %v906
  %v1111 = vpack.c.b16 %v915, %v911
  %v1112 = vpack.c.b16 %v916, %v912
  %v1113 = vpack.c.b16 %v917, %v913
  %v1114 = vpack.c.b16 %v918, %v914
  %vm1311 = vcmask 130048
  %v1313 = vsel %vm1311, %v311, 0
  %v1316 = vsel %vm1311, %v318, 0
  %1318 = vmatprep.subr.bf16.mxu0 %v948
  %1319 = vmatpush1.bf16.msra.mxu0 %v947
  %1320 = vmatprep.subr.bf16.mxu0 %v944
  %1321 = vmatpush1.bf16.msra.mxu0 %v943
  %1322 = vmatprep.subr.bf16.mxu0 %v940
  %1323 = vmatpush1.bf16.msra.mxu0 %v939
  %1324 = vmatprep.subr.bf16.mxu0 %v936
  %1325 = vmatpush1.bf16.msra.mxu0 %v935
  %1326 = vmatprep.subr.bf16.mxu0 %v932
  %1327 = vmatpush1.bf16.msra.mxu0 %v931
  %1328 = vmatprep.subr.bf16.mxu0 %v928
  %1329 = vmatpush1.bf16.msra.mxu0 %v927
  %1330 = vmatprep.subr.bf16.mxu0 %v924
  %1331 = vmatpush1.bf16.msra.mxu0 %v923
  %1332 = vmatprep.subr.bf16.mxu0 %v920
  %1333 = vmatpush1.bf16.msra.mxu0 %v919
  %1334 = vmatprep.subr.bf16.mxu0 %v980
  %1335 = vmatpush2.bf16.msra.mxu0 %v979
  %1336 = vmatprep.subr.bf16.mxu0 %v976
  %1337 = vmatpush2.bf16.msra.mxu0 %v975
  %1338 = vmatprep.subr.bf16.mxu0 %v972
  %1339 = vmatpush2.bf16.msra.mxu0 %v971
  %1340 = vmatprep.subr.bf16.mxu0 %v968
  %1341 = vmatpush2.bf16.msra.mxu0 %v967
  %1342 = vmatprep.subr.bf16.mxu0 %v964
  %1343 = vmatpush2.bf16.msra.mxu0 %v963
  %1344 = vmatprep.subr.bf16.mxu0 %v960
  %1345 = vmatpush2.bf16.msra.mxu0 %v959
  %1346 = vmatprep.subr.bf16.mxu0 %v956
  %1347 = vmatpush2.bf16.msra.mxu0 %v955
  %1348 = vmatprep.subr.bf16.mxu0 %v952
  %1349 = vmatpush2.bf16.msra.mxu0 %v951
  %1350 = vmatprep.mubr.bf16.mxu0 %v306
  %1351 = vmatmul.mubr.bf16.gmra.mxu0 %v305
  %v1352 = vpop.f32.mrf.mxu0
  %v1353 = vadd.f32 %v244, %v1352
  %v1354 = vpop.f32.mrf.mxu0
  %v1355 = vadd.f32 %v248, %v1354
  %v1356 = vpop.f32.mrf.mxu0
  %v1357 = vadd.f32 %v244, %v1356
  %v1358 = vpop.f32.mrf.mxu0
  %v1359 = vadd.f32 %v248, %v1358
  %1360 = vmatprep.mubr.bf16.mxu0 %v313
  %1361 = vmatmul.mubr.bf16.gmra.mxu0 %v312
  %v1362 = vpop.f32.mrf.mxu0
  %v1363 = vadd.f32 %v244, %v1362
  %v1364 = vpop.f32.mrf.mxu0
  %v1365 = vadd.f32 %v248, %v1364
  %v1366 = vpop.f32.mrf.mxu0
  %v1367 = vadd.f32 %v244, %v1366
  %v1368 = vpop.f32.mrf.mxu0
  %v1369 = vadd.f32 %v248, %v1368
  %1370 = vdwg.mxu0
  %1371 = vmatprep.subr.bf16.mxu0 %v1012
  %1372 = vmatpush1.bf16.msra.mxu0 %v1011
  %1373 = vmatprep.subr.bf16.mxu0 %v1008
  %1374 = vmatpush1.bf16.msra.mxu0 %v1007
  %1375 = vmatprep.subr.bf16.mxu0 %v1004
  %1376 = vmatpush1.bf16.msra.mxu0 %v1003
  %1377 = vmatprep.subr.bf16.mxu0 %v1000
  %1378 = vmatpush1.bf16.msra.mxu0 %v999
  %1379 = vmatprep.subr.bf16.mxu0 %v996
  %1380 = vmatpush1.bf16.msra.mxu0 %v995
  %1381 = vmatprep.subr.bf16.mxu0 %v992
  %1382 = vmatpush1.bf16.msra.mxu0 %v991
  %1383 = vmatprep.subr.bf16.mxu0 %v988
  %1384 = vmatpush1.bf16.msra.mxu0 %v987
  %1385 = vmatprep.subr.bf16.mxu0 %v984
  %1386 = vmatpush1.bf16.msra.mxu0 %v983
  %1387 = vmatprep.subr.bf16.mxu0 %v1044
  %1388 = vmatpush2.bf16.msra.mxu0 %v1043
  %1389 = vmatprep.subr.bf16.mxu0 %v1040
  %1390 = vmatpush2.bf16.msra.mxu0 %v1039
  %1391 = vmatprep.subr.bf16.mxu0 %v1036
  %1392 = vmatpush2.bf16.msra.mxu0 %v1035
  %1393 = vmatprep.subr.bf16.mxu0 %v1032
  %1394 = vmatpush2.bf16.msra.mxu0 %v1031
  %1395 = vmatprep.subr.bf16.mxu0 %v1028
  %1396 = vmatpush2.bf16.msra.mxu0 %v1027
  %1397 = vmatprep.subr.bf16.mxu0 %v1024
  %1398 = vmatpush2.bf16.msra.mxu0 %v1023
  %1399 = vmatprep.subr.bf16.mxu0 %v1020
  %1400 = vmatpush2.bf16.msra.mxu0 %v1019
  %1401 = vmatprep.subr.bf16.mxu0 %v1016
  %1402 = vmatpush2.bf16.msra.mxu0 %v1015
  %1403 = vmatprep.mubr.bf16.mxu0 %v308
  %1404 = vmatmul.mubr.bf16.gmra.mxu0 %v307
  %v1405 = vpop.f32.mrf.mxu0
  %v1406 = vadd.f32 %v1353, %v1405
  %v1407 = vpop.f32.mrf.mxu0
  %v1408 = vadd.f32 %v1355, %v1407
  %v1409 = vpop.f32.mrf.mxu0
  %v1410 = vadd.f32 %v1357, %v1409
  %v1411 = vpop.f32.mrf.mxu0
  %v1412 = vadd.f32 %v1359, %v1411
  %1413 = vmatprep.mubr.bf16.mxu0 %v315
  %1414 = vmatmul.mubr.bf16.gmra.mxu0 %v314
  %v1415 = vpop.f32.mrf.mxu0
  %v1416 = vadd.f32 %v1363, %v1415
  %v1417 = vpop.f32.mrf.mxu0
  %v1418 = vadd.f32 %v1365, %v1417
  %v1419 = vpop.f32.mrf.mxu0
  %v1420 = vadd.f32 %v1367, %v1419
  %v1421 = vpop.f32.mrf.mxu0
  %v1422 = vadd.f32 %v1369, %v1421
  %1423 = vdwg.mxu0
  %1424 = vmatprep.subr.bf16.mxu0 %v1076
  %1425 = vmatpush1.bf16.msra.mxu0 %v1075
  %1426 = vmatprep.subr.bf16.mxu0 %v1072
  %1427 = vmatpush1.bf16.msra.mxu0 %v1071
  %1428 = vmatprep.subr.bf16.mxu0 %v1068
  %1429 = vmatpush1.bf16.msra.mxu0 %v1067
  %1430 = vmatprep.subr.bf16.mxu0 %v1064
  %1431 = vmatpush1.bf16.msra.mxu0 %v1063
  %1432 = vmatprep.subr.bf16.mxu0 %v1060
  %1433 = vmatpush1.bf16.msra.mxu0 %v1059
  %1434 = vmatprep.subr.bf16.mxu0 %v1056
  %1435 = vmatpush1.bf16.msra.mxu0 %v1055
  %1436 = vmatprep.subr.bf16.mxu0 %v1052
  %1437 = vmatpush1.bf16.msra.mxu0 %v1051
  %1438 = vmatprep.subr.bf16.mxu0 %v1048
  %1439 = vmatpush1.bf16.msra.mxu0 %v1047
  %1440 = vmatprep.subr.bf16.mxu0 %v1108
  %1441 = vmatpush2.bf16.msra.mxu0 %v1107
  %1442 = vmatprep.subr.bf16.mxu0 %v1104
  %1443 = vmatpush2.bf16.msra.mxu0 %v1103
  %1444 = vmatprep.subr.bf16.mxu0 %v1100
  %1445 = vmatpush2.bf16.msra.mxu0 %v1099
  %1446 = vmatprep.subr.bf16.mxu0 %v1096
  %1447 = vmatpush2.bf16.msra.mxu0 %v1095
  %1448 = vmatprep.subr.bf16.mxu0 %v1092
  %1449 = vmatpush2.bf16.msra.mxu0 %v1091
  %1450 = vmatprep.subr.bf16.mxu0 %v1088
  %1451 = vmatpush2.bf16.msra.mxu0 %v1087
  %1452 = vmatprep.subr.bf16.mxu0 %v1084
  %1453 = vmatpush2.bf16.msra.mxu0 %v1083
  %1454 = vmatprep.subr.bf16.mxu0 %v1080
  %1455 = vmatpush2.bf16.msra.mxu0 %v1079
  %1456 = vmatprep.mubr.bf16.mxu0 %v310
  %1457 = vmatmul.mubr.bf16.gmra.mxu0 %v309
  %v1458 = vpop.f32.mrf.mxu0
  %v1459 = vadd.f32 %v1406, %v1458
  %v1460 = vpop.f32.mrf.mxu0
  %v1461 = vadd.f32 %v1408, %v1460
  %v1462 = vpop.f32.mrf.mxu0
  %v1463 = vadd.f32 %v1410, %v1462
  %v1464 = vpop.f32.mrf.mxu0
  %v1465 = vadd.f32 %v1412, %v1464
  %1466 = vmatprep.mubr.bf16.mxu0 %v317
  %1467 = vmatmul.mubr.bf16.gmra.mxu0 %v316
  %v1468 = vpop.f32.mrf.mxu0
  %v1469 = vadd.f32 %v1416, %v1468
  %v1470 = vpop.f32.mrf.mxu0
  %v1471 = vadd.f32 %v1418, %v1470
  %v1472 = vpop.f32.mrf.mxu0
  %v1473 = vadd.f32 %v1420, %v1472
  %v1474 = vpop.f32.mrf.mxu0
  %v1475 = vadd.f32 %v1422, %v1474
  %1476 = vdwg.mxu0
  %1477 = vmatprep.subr.bf16.mxu0 0
  %1478 = vmatpush1.bf16.msra.mxu0 0
  %1479 = vmatprep.subr.bf16.mxu0 0
  %1480 = vmatpush1.bf16.msra.mxu0 0
  %1481 = vmatprep.subr.bf16.mxu0 0
  %1482 = vmatpush1.bf16.msra.mxu0 0
  %1483 = vmatprep.subr.bf16.mxu0 0
  %1484 = vmatpush1.bf16.msra.mxu0 0
  %1485 = vmatprep.subr.bf16.mxu0 0
  %1486 = vmatpush1.bf16.msra.mxu0 0
  %1487 = vmatprep.subr.bf16.mxu0 0
  %1488 = vmatpush1.bf16.msra.mxu0 0
  %1489 = vmatprep.subr.bf16.mxu0 0
  %1490 = vmatpush1.bf16.msra.mxu0 0
  %1491 = vmatprep.subr.bf16.mxu0 %v1112
  %1492 = vmatpush1.bf16.msra.mxu0 %v1111
  %1493 = vmatprep.subr.bf16.mxu0 0
  %1494 = vmatpush2.bf16.msra.mxu0 0
  %1495 = vmatprep.subr.bf16.mxu0 0
  %1496 = vmatpush2.bf16.msra.mxu0 0
  %1497 = vmatprep.subr.bf16.mxu0 0
  %1498 = vmatpush2.bf16.msra.mxu0 0
  %1499 = vmatprep.subr.bf16.mxu0 0
  %1500 = vmatpush2.bf16.msra.mxu0 0
  %1501 = vmatprep.subr.bf16.mxu0 0
  %1502 = vmatpush2.bf16.msra.mxu0 0
  %1503 = vmatprep.subr.bf16.mxu0 0
  %1504 = vmatpush2.bf16.msra.mxu0 0
  %1505 = vmatprep.subr.bf16.mxu0 0
  %1506 = vmatpush2.bf16.msra.mxu0 0
  %1507 = vmatprep.subr.bf16.mxu0 0
  %1508 = vmatpush2.bf16.msra.mxu0 0
  %1509 = vmatprep.mubr.bf16.mxu0 0
  %1510 = vmatmul.mubr.bf16.gmra.mxu0 %v1313
  %v1511 = vpop.f32.mrf.mxu0
  %v1512 = vadd.f32 %v1459, %v1511
  %v1513 = vpop.f32.mrf.mxu0
  %v1514 = vadd.f32 %v1461, %v1513
  %v1515 = vpop.f32.mrf.mxu0
  %v1516 = vadd.f32 %v1463, %v1515
  %v1517 = vpop.f32.mrf.mxu0
  %v1518 = vadd.f32 %v1465, %v1517
  %1519 = vmatprep.mubr.bf16.mxu0 0
  %1520 = vmatmul.mubr.bf16.gmra.mxu0 %v1316
  %v1521 = vpop.f32.mrf.mxu0
  %v1522 = vadd.f32 %v1469, %v1521
  %v1523 = vpop.f32.mrf.mxu0
  %v1524 = vadd.f32 %v1471, %v1523
  %v1525 = vpop.f32.mrf.mxu0
  %v1526 = vadd.f32 %v1473, %v1525
  %v1527 = vpop.f32.mrf.mxu0
  %v1528 = vadd.f32 %v1475, %v1527
  %1529 = vdwg.mxu0
  %1530 = vmatprep.subr.bf16.mxu0 %v950
  %1531 = vmatpush1.bf16.msra.mxu0 %v949
  %1532 = vmatprep.subr.bf16.mxu0 %v946
  %1533 = vmatpush1.bf16.msra.mxu0 %v945
  %1534 = vmatprep.subr.bf16.mxu0 %v942
  %1535 = vmatpush1.bf16.msra.mxu0 %v941
  %1536 = vmatprep.subr.bf16.mxu0 %v938
  %1537 = vmatpush1.bf16.msra.mxu0 %v937
  %1538 = vmatprep.subr.bf16.mxu0 %v934
  %1539 = vmatpush1.bf16.msra.mxu0 %v933
  %1540 = vmatprep.subr.bf16.mxu0 %v930
  %1541 = vmatpush1.bf16.msra.mxu0 %v929
  %1542 = vmatprep.subr.bf16.mxu0 %v926
  %1543 = vmatpush1.bf16.msra.mxu0 %v925
  %1544 = vmatprep.subr.bf16.mxu0 %v922
  %1545 = vmatpush1.bf16.msra.mxu0 %v921
  %1546 = vmatprep.subr.bf16.mxu0 %v982
  %1547 = vmatpush2.bf16.msra.mxu0 %v981
  %1548 = vmatprep.subr.bf16.mxu0 %v978
  %1549 = vmatpush2.bf16.msra.mxu0 %v977
  %1550 = vmatprep.subr.bf16.mxu0 %v974
  %1551 = vmatpush2.bf16.msra.mxu0 %v973
  %1552 = vmatprep.subr.bf16.mxu0 %v970
  %1553 = vmatpush2.bf16.msra.mxu0 %v969
  %1554 = vmatprep.subr.bf16.mxu0 %v966
  %1555 = vmatpush2.bf16.msra.mxu0 %v965
  %1556 = vmatprep.subr.bf16.mxu0 %v962
  %1557 = vmatpush2.bf16.msra.mxu0 %v961
  %1558 = vmatprep.subr.bf16.mxu0 %v958
  %1559 = vmatpush2.bf16.msra.mxu0 %v957
  %1560 = vmatprep.subr.bf16.mxu0 %v954
  %1561 = vmatpush2.bf16.msra.mxu0 %v953
  %1562 = vmatprep.mubr.bf16.mxu0 %v306
  %1563 = vmatmul.mubr.bf16.gmra.mxu0 %v305
  %v1564 = vpop.f32.mrf.mxu0
  %v1565 = vadd.f32 %v252, %v1564
  %v1566 = vpop.f32.mrf.mxu0
  %v1567 = vadd.f32 %v256, %v1566
  %v1568 = vpop.f32.mrf.mxu0
  %v1569 = vadd.f32 %v252, %v1568
  %v1570 = vpop.f32.mrf.mxu0
  %v1571 = vadd.f32 %v256, %v1570
  %1572 = vmatprep.mubr.bf16.mxu0 %v313
  %1573 = vmatmul.mubr.bf16.gmra.mxu0 %v312
  %v1574 = vpop.f32.mrf.mxu0
  %v1575 = vadd.f32 %v252, %v1574
  %v1576 = vpop.f32.mrf.mxu0
  %v1577 = vadd.f32 %v256, %v1576
  %v1578 = vpop.f32.mrf.mxu0
  %v1579 = vadd.f32 %v252, %v1578
  %v1580 = vpop.f32.mrf.mxu0
  %v1581 = vadd.f32 %v256, %v1580
  %1582 = vdwg.mxu0
  %1583 = vmatprep.subr.bf16.mxu0 %v1014
  %1584 = vmatpush1.bf16.msra.mxu0 %v1013
  %1585 = vmatprep.subr.bf16.mxu0 %v1010
  %1586 = vmatpush1.bf16.msra.mxu0 %v1009
  %1587 = vmatprep.subr.bf16.mxu0 %v1006
  %1588 = vmatpush1.bf16.msra.mxu0 %v1005
  %1589 = vmatprep.subr.bf16.mxu0 %v1002
  %1590 = vmatpush1.bf16.msra.mxu0 %v1001
  %1591 = vmatprep.subr.bf16.mxu0 %v998
  %1592 = vmatpush1.bf16.msra.mxu0 %v997
  %1593 = vmatprep.subr.bf16.mxu0 %v994
  %1594 = vmatpush1.bf16.msra.mxu0 %v993
  %1595 = vmatprep.subr.bf16.mxu0 %v990
  %1596 = vmatpush1.bf16.msra.mxu0 %v989
  %1597 = vmatprep.subr.bf16.mxu0 %v986
  %1598 = vmatpush1.bf16.msra.mxu0 %v985
  %1599 = vmatprep.subr.bf16.mxu0 %v1046
  %1600 = vmatpush2.bf16.msra.mxu0 %v1045
  %1601 = vmatprep.subr.bf16.mxu0 %v1042
  %1602 = vmatpush2.bf16.msra.mxu0 %v1041
  %1603 = vmatprep.subr.bf16.mxu0 %v1038
  %1604 = vmatpush2.bf16.msra.mxu0 %v1037
  %1605 = vmatprep.subr.bf16.mxu0 %v1034
  %1606 = vmatpush2.bf16.msra.mxu0 %v1033
  %1607 = vmatprep.subr.bf16.mxu0 %v1030
  %1608 = vmatpush2.bf16.msra.mxu0 %v1029
  %1609 = vmatprep.subr.bf16.mxu0 %v1026
  %1610 = vmatpush2.bf16.msra.mxu0 %v1025
  %1611 = vmatprep.subr.bf16.mxu0 %v1022
  %1612 = vmatpush2.bf16.msra.mxu0 %v1021
  %1613 = vmatprep.subr.bf16.mxu0 %v1018
  %1614 = vmatpush2.bf16.msra.mxu0 %v1017
  %1615 = vmatprep.mubr.bf16.mxu0 %v308
  %1616 = vmatmul.mubr.bf16.gmra.mxu0 %v307
  %v1617 = vpop.f32.mrf.mxu0
  %v1618 = vadd.f32 %v1565, %v1617
  %v1619 = vpop.f32.mrf.mxu0
  %v1620 = vadd.f32 %v1567, %v1619
  %v1621 = vpop.f32.mrf.mxu0
  %v1622 = vadd.f32 %v1569, %v1621
  %v1623 = vpop.f32.mrf.mxu0
  %v1624 = vadd.f32 %v1571, %v1623
  %1625 = vmatprep.mubr.bf16.mxu0 %v315
  %1626 = vmatmul.mubr.bf16.gmra.mxu0 %v314
  %v1627 = vpop.f32.mrf.mxu0
  %v1628 = vadd.f32 %v1575, %v1627
  %v1629 = vpop.f32.mrf.mxu0
  %v1630 = vadd.f32 %v1577, %v1629
  %v1631 = vpop.f32.mrf.mxu0
  %v1632 = vadd.f32 %v1579, %v1631
  %v1633 = vpop.f32.mrf.mxu0
  %v1634 = vadd.f32 %v1581, %v1633
  %1635 = vdwg.mxu0
  %1636 = vmatprep.subr.bf16.mxu0 %v1078
  %1637 = vmatpush1.bf16.msra.mxu0 %v1077
  %1638 = vmatprep.subr.bf16.mxu0 %v1074
  %1639 = vmatpush1.bf16.msra.mxu0 %v1073
  %1640 = vmatprep.subr.bf16.mxu0 %v1070
  %1641 = vmatpush1.bf16.msra.mxu0 %v1069
  %1642 = vmatprep.subr.bf16.mxu0 %v1066
  %1643 = vmatpush1.bf16.msra.mxu0 %v1065
  %1644 = vmatprep.subr.bf16.mxu0 %v1062
  %1645 = vmatpush1.bf16.msra.mxu0 %v1061
  %1646 = vmatprep.subr.bf16.mxu0 %v1058
  %1647 = vmatpush1.bf16.msra.mxu0 %v1057
  %1648 = vmatprep.subr.bf16.mxu0 %v1054
  %1649 = vmatpush1.bf16.msra.mxu0 %v1053
  %1650 = vmatprep.subr.bf16.mxu0 %v1050
  %1651 = vmatpush1.bf16.msra.mxu0 %v1049
  %1652 = vmatprep.subr.bf16.mxu0 %v1110
  %1653 = vmatpush2.bf16.msra.mxu0 %v1109
  %1654 = vmatprep.subr.bf16.mxu0 %v1106
  %1655 = vmatpush2.bf16.msra.mxu0 %v1105
  %1656 = vmatprep.subr.bf16.mxu0 %v1102
  %1657 = vmatpush2.bf16.msra.mxu0 %v1101
  %1658 = vmatprep.subr.bf16.mxu0 %v1098
  %1659 = vmatpush2.bf16.msra.mxu0 %v1097
  %1660 = vmatprep.subr.bf16.mxu0 %v1094
  %1661 = vmatpush2.bf16.msra.mxu0 %v1093
  %1662 = vmatprep.subr.bf16.mxu0 %v1090
  %1663 = vmatpush2.bf16.msra.mxu0 %v1089
  %1664 = vmatprep.subr.bf16.mxu0 %v1086
  %1665 = vmatpush2.bf16.msra.mxu0 %v1085
  %1666 = vmatprep.subr.bf16.mxu0 %v1082
  %1667 = vmatpush2.bf16.msra.mxu0 %v1081
  %1668 = vmatprep.mubr.bf16.mxu0 %v310
  %1669 = vmatmul.mubr.bf16.gmra.mxu0 %v309
  %v1670 = vpop.f32.mrf.mxu0
  %v1671 = vadd.f32 %v1618, %v1670
  %v1672 = vpop.f32.mrf.mxu0
  %v1673 = vadd.f32 %v1620, %v1672
  %v1674 = vpop.f32.mrf.mxu0
  %v1675 = vadd.f32 %v1622, %v1674
  %v1676 = vpop.f32.mrf.mxu0
  %v1677 = vadd.f32 %v1624, %v1676
  %1678 = vmatprep.mubr.bf16.mxu0 %v317
  %1679 = vmatmul.mubr.bf16.gmra.mxu0 %v316
  %v1680 = vpop.f32.mrf.mxu0
  %v1681 = vadd.f32 %v1628, %v1680
  %v1682 = vpop.f32.mrf.mxu0
  %v1683 = vadd.f32 %v1630, %v1682
  %v1684 = vpop.f32.mrf.mxu0
  %v1685 = vadd.f32 %v1632, %v1684
  %v1686 = vpop.f32.mrf.mxu0
  %v1687 = vadd.f32 %v1634, %v1686
  %1688 = vdwg.mxu0
  %1689 = vmatprep.subr.bf16.mxu0 0
  %1690 = vmatpush1.bf16.msra.mxu0 0
  %1691 = vmatprep.subr.bf16.mxu0 0
  %1692 = vmatpush1.bf16.msra.mxu0 0
  %1693 = vmatprep.subr.bf16.mxu0 0
  %1694 = vmatpush1.bf16.msra.mxu0 0
  %1695 = vmatprep.subr.bf16.mxu0 0
  %1696 = vmatpush1.bf16.msra.mxu0 0
  %1697 = vmatprep.subr.bf16.mxu0 0
  %1698 = vmatpush1.bf16.msra.mxu0 0
  %1699 = vmatprep.subr.bf16.mxu0 0
  %1700 = vmatpush1.bf16.msra.mxu0 0
  %1701 = vmatprep.subr.bf16.mxu0 0
  %1702 = vmatpush1.bf16.msra.mxu0 0
  %1703 = vmatprep.subr.bf16.mxu0 %v1114
  %1704 = vmatpush1.bf16.msra.mxu0 %v1113
  %1705 = vmatprep.subr.bf16.mxu0 0
  %1706 = vmatpush2.bf16.msra.mxu0 0
  %1707 = vmatprep.subr.bf16.mxu0 0
  %1708 = vmatpush2.bf16.msra.mxu0 0
  %1709 = vmatprep.subr.bf16.mxu0 0
  %1710 = vmatpush2.bf16.msra.mxu0 0
  %1711 = vmatprep.subr.bf16.mxu0 0
  %1712 = vmatpush2.bf16.msra.mxu0 0
  %1713 = vmatprep.subr.bf16.mxu0 0
  %1714 = vmatpush2.bf16.msra.mxu0 0
  %1715 = vmatprep.subr.bf16.mxu0 0
  %1716 = vmatpush2.bf16.msra.mxu0 0
  %1717 = vmatprep.subr.bf16.mxu0 0
  %1718 = vmatpush2.bf16.msra.mxu0 0
  %1719 = vmatprep.subr.bf16.mxu0 0
  %1720 = vmatpush2.bf16.msra.mxu0 0
  %1721 = vmatprep.mubr.bf16.mxu0 0
  %1722 = vmatmul.mubr.bf16.gmra.mxu0 %v1313
  %v1723 = vpop.f32.mrf.mxu0
  %v1724 = vadd.f32 %v1671, %v1723
  %v1725 = vpop.f32.mrf.mxu0
  %v1726 = vadd.f32 %v1673, %v1725
  %v1727 = vpop.f32.mrf.mxu0
  %v1728 = vadd.f32 %v1675, %v1727
  %v1729 = vpop.f32.mrf.mxu0
  %v1730 = vadd.f32 %v1677, %v1729
  %1731 = vmatprep.mubr.bf16.mxu0 0
  %1732 = vmatmul.mubr.bf16.gmra.mxu0 %v1316
  %v1733 = vpop.f32.mrf.mxu0
  %v1734 = vadd.f32 %v1681, %v1733
  %v1735 = vpop.f32.mrf.mxu0
  %v1736 = vadd.f32 %v1683, %v1735
  %v1737 = vpop.f32.mrf.mxu0
  %v1738 = vadd.f32 %v1685, %v1737
  %v1739 = vpop.f32.mrf.mxu0
  %v1740 = vadd.f32 %v1687, %v1739
  %1741 = vdwg.mxu0
  %v1742 = vadd.f32 %v1512, 0.0
  %v1743 = vadd.f32 %v1514, 0.0
  %v1744 = vadd.f32 %v1724, 0.0
  %v1745 = vadd.f32 %v1726, 0.0
  %vm1746 = vcmp.gt.f32.partialorder %v1742, 0.5
  %vm1747 = vcmp.gt.f32.partialorder %v1743, 0.5
  %vm1748 = vcmp.gt.f32.partialorder %v1744, 0.5
  %vm1749 = vcmp.gt.f32.partialorder %v1745, 0.5
  %v1750 = vsel %vm1746, 1, 0
  %v1751 = vsel %vm1747, 1, 0
  %v1752 = vsel %vm1748, 1, 0
  %v1753 = vsel %vm1749, 1, 0
  %v1754 = vcvt.s32.f32 %v1750
  %v1755 = vcvt.s32.f32 %v1751
  %v1756 = vcvt.s32.f32 %v1752
  %v1757 = vcvt.s32.f32 %v1753
  %v1758 = vsub.f32 1.0, %v1754
  %v1759 = vsub.f32 1.0, %v1755
  %v1760 = vsub.f32 1.0, %v1756
  %v1761 = vsub.f32 1.0, %v1757
  %v1762 = vmul.f32 %v1758, 0.2
  %v1763 = vmul.f32 %v1759, 0.2
  %v1764 = vmul.f32 %v1760, 0.2
  %v1765 = vmul.f32 %v1761, 0.2
  %v1766 = vmul.f32 %v1742, %v1762
  %v1767 = vmul.f32 %v1743, %v1763
  %v1768 = vmul.f32 %v1744, %v1764
  %v1769 = vmul.f32 %v1745, %v1765
  %v1770 = vadd.f32 %v1766, %v1516
  %v1771 = vadd.f32 %v1767, %v1518
  %v1772 = vadd.f32 %v1768, %v1728
  %v1773 = vadd.f32 %v1769, %v1730
  %vm1774 = vcmp.gt.f32.partialorder %v1770, 0.5
  %vm1775 = vcmp.gt.f32.partialorder %v1771, 0.5
  %vm1776 = vcmp.gt.f32.partialorder %v1772, 0.5
  %vm1777 = vcmp.gt.f32.partialorder %v1773, 0.5
  %v1778 = vsel %vm1774, 1, 0
  %v1779 = vsel %vm1775, 1, 0
  %v1780 = vsel %vm1776, 1, 0
  %v1781 = vsel %vm1777, 1, 0
  %v1782 = vcvt.s32.f32 %v1778
  %v1783 = vcvt.s32.f32 %v1779
  %v1784 = vcvt.s32.f32 %v1780
  %v1785 = vcvt.s32.f32 %v1781
  %v1786 = vsub.f32 1.0, %v1782
  %v1787 = vsub.f32 1.0, %v1783
  %v1788 = vsub.f32 1.0, %v1784
  %v1789 = vsub.f32 1.0, %v1785
  %v1790 = vmul.f32 %v1786, 0.2
  %v1791 = vmul.f32 %v1787, 0.2
  %v1792 = vmul.f32 %v1788, 0.2
  %v1793 = vmul.f32 %v1789, 0.2
  %v1794 = vmul.f32 %v1770, %v1790
  %v1795 = vmul.f32 %v1771, %v1791
  %v1796 = vmul.f32 %v1772, %v1792
  %v1797 = vmul.f32 %v1773, %v1793
  %v1798 = vadd.f32 %v1794, %v1522
  %v1799 = vadd.f32 %v1795, %v1524
  %v1800 = vadd.f32 %v1796, %v1734
  %v1801 = vadd.f32 %v1797, %v1736
  %vm1802 = vcmp.gt.f32.partialorder %v1798, 0.5
  %vm1803 = vcmp.gt.f32.partialorder %v1799, 0.5
  %vm1804 = vcmp.gt.f32.partialorder %v1800, 0.5
  %vm1805 = vcmp.gt.f32.partialorder %v1801, 0.5
  %v1806 = vsel %vm1802, 1, 0
  %v1807 = vsel %vm1803, 1, 0
  %v1808 = vsel %vm1804, 1, 0
  %v1809 = vsel %vm1805, 1, 0
  %v1810 = vcvt.s32.f32 %v1806
  %v1811 = vcvt.s32.f32 %v1807
  %v1812 = vcvt.s32.f32 %v1808
  %v1813 = vcvt.s32.f32 %v1809
  %v1814 = vsub.f32 1.0, %v1810
  %v1815 = vsub.f32 1.0, %v1811
  %v1816 = vsub.f32 1.0, %v1812
  %v1817 = vsub.f32 1.0, %v1813
  %v1818 = vmul.f32 %v1814, 0.2
  %v1819 = vmul.f32 %v1815, 0.2
  %v1820 = vmul.f32 %v1816, 0.2
  %v1821 = vmul.f32 %v1817, 0.2
  %v1822 = vmul.f32 %v1798, %v1818
  %v1823 = vmul.f32 %v1799, %v1819
  %v1824 = vmul.f32 %v1800, %v1820
  %v1825 = vmul.f32 %v1801, %v1821
  %v1826 = vadd.f32 %v1822, %v1526
  %v1827 = vadd.f32 %v1823, %v1528
  %v1828 = vadd.f32 %v1824, %v1738
  %v1829 = vadd.f32 %v1825, %v1740
  %vm1830 = vcmp.gt.f32.partialorder %v1826, 0.5
  %vm1831 = vcmp.gt.f32.partialorder %v1827, 0.5
  %vm1832 = vcmp.gt.f32.partialorder %v1828, 0.5
  %vm1833 = vcmp.gt.f32.partialorder %v1829, 0.5
  %v1834 = vsel %vm1830, 1, 0
  %v1835 = vsel %vm1831, 1, 0
  %v1836 = vsel %vm1832, 1, 0
  %v1837 = vsel %vm1833, 1, 0
  %v1838 = vcvt.s32.f32 %v1834
  %v1839 = vcvt.s32.f32 %v1835
  %v1840 = vcvt.s32.f32 %v1836
  %v1841 = vcvt.s32.f32 %v1837
  %v1842 = vpack.c.bf16 %v1782, %v1754
  %v1843 = vpack.c.bf16 %v1783, %v1755
  %v1844 = vpack.c.bf16 %v1784, %v1756
  %v1845 = vpack.c.bf16 %v1785, %v1757
  %v1846 = vpack.c.bf16 %v1838, %v1810
  %v1847 = vpack.c.bf16 %v1839, %v1811
  %v1848 = vpack.c.bf16 %v1840, %v1812
  %v1849 = vpack.c.bf16 %v1841, %v1813
  %v1850 = vld [vmem:[%s3] sm:$0xff]
  %v1851 = vld [vmem:[%s3 + $0x8] sm:$0xff]
  %v1852 = vld [vmem:[%s3 + $0x10] sm:$0xff]
  %v1853 = vld [vmem:[%s3 + $0x18] sm:$0xff]
  %v1854 = vld [vmem:[%s3 + $0x20] sm:$0xff]
  %v1855 = vld [vmem:[%s3 + $0x28] sm:$0xff]
  %v1856 = vld [vmem:[%s3 + $0x30] sm:$0xff]
  %v1857 = vld [vmem:[%s3 + $0x38] sm:$0xff]
  %v1858 = vld [vmem:[%s3 + $0x40] sm:$0xff]
  %v1859 = vld [vmem:[%s3 + $0x48] sm:$0xff]
  %v1860 = vld [vmem:[%s3 + $0x50] sm:$0xff]
  %v1861 = vld [vmem:[%s3 + $0x58] sm:$0xff]
  %v1862 = vld [vmem:[%s3 + $0x60] sm:$0xff]
  %v1863 = vld [vmem:[%s3 + $0x68] sm:$0xff]
  %v1864 = vld [vmem:[%s3 + $0x70] sm:$0xff]
  %v1865 = vld [vmem:[%s3 + $0x78] sm:$0xff]
  %v1866 = vld [vmem:[%s3 + $0x80] sm:$0xff]
  %v1867 = vld [vmem:[%s3 + $0x88] sm:$0xff]
  %v1868 = vld [vmem:[%s3 + $0x90] sm:$0xff]
  %v1869 = vld [vmem:[%s3 + $0x98] sm:$0xff]
  %v1870 = vld [vmem:[%s3 + $0xa0] sm:$0xff]
  %v1871 = vld [vmem:[%s3 + $0xa8] sm:$0xff]
  %v1872 = vld [vmem:[%s3 + $0xb0] sm:$0xff]
  %v1873 = vld [vmem:[%s3 + $0xb8] sm:$0xff]
  %v1874 = vld [vmem:[%s3 + $0xc0] sm:$0xff]
  %v1875 = vld [vmem:[%s3 + $0xc8] sm:$0xff]
  %v1876 = vld [vmem:[%s3 + $0xd0] sm:$0xff]
  %v1877 = vld [vmem:[%s3 + $0xd8] sm:$0xff]
  %v1878 = vld [vmem:[%s3 + $0xe0] sm:$0xff]
  %v1879 = vld [vmem:[%s3 + $0xe8] sm:$0xff]
  %v1880 = vld [vmem:[%s3 + $0xf0] sm:$0xff]
  %v1881 = vld [vmem:[%s3 + $0xf8] sm:$0xff]
  %v1882 = vld [vmem:[%s3 + $0x100] sm:$0xff]
  %v1883 = vld [vmem:[%s3 + $0x108] sm:$0xff]
  %v1884 = vld [vmem:[%s3 + $0x110] sm:$0xff]
  %v1885 = vld [vmem:[%s3 + $0x118] sm:$0xff]
  %v1886 = vld [vmem:[%s3 + $0x120] sm:$0xff]
  %v1887 = vld [vmem:[%s3 + $0x128] sm:$0xff]
  %v1888 = vld [vmem:[%s3 + $0x130] sm:$0xff]
  %v1889 = vld [vmem:[%s3 + $0x138] sm:$0xff]
  %v1890 = vld [vmem:[%s3 + $0x140] sm:$0xff]
  %v1891 = vld [vmem:[%s3 + $0x148] sm:$0xff]
  %v1892 = vld [vmem:[%s3 + $0x150] sm:$0xff]
  %v1893 = vld [vmem:[%s3 + $0x158] sm:$0xff]
  %v1894 = vld [vmem:[%s3 + $0x160] sm:$0xff]
  %v1895 = vld [vmem:[%s3 + $0x168] sm:$0xff]
  %v1896 = vld [vmem:[%s3 + $0x170] sm:$0xff]
  %v1897 = vld [vmem:[%s3 + $0x178] sm:$0xff]
  %v1898 = vld [vmem:[%s3 + $0x180] sm:$0xff]
  %v1899 = vld [vmem:[%s3 + $0x188] sm:$0xff]
  %v1900 = vld [vmem:[%s3 + $0x190] sm:$0xff]
  %v1901 = vld [vmem:[%s3 + $0x198] sm:$0xff]
  %v1902 = vld [vmem:[%s3 + $0x1a0] sm:$0xff]
  %v1903 = vld [vmem:[%s3 + $0x1a8] sm:$0xff]
  %v1904 = vld [vmem:[%s3 + $0x1b0] sm:$0xff]
  %v1905 = vld [vmem:[%s3 + $0x1b8] sm:$0xff]
  %v1906 = vld [vmem:[%s3 + $0x1c0] sm:$0xff]
  %v1907 = vld [vmem:[%s3 + $0x1c8] sm:$0xff]
  %v1908 = vld [vmem:[%s3 + $0x1d0] sm:$0xff]
  %v1909 = vld [vmem:[%s3 + $0x1d8] sm:$0xff]
  %v1910 = vld [vmem:[%s3 + $0x1e0] sm:$0xff]
  %v1911 = vld [vmem:[%s3 + $0x1e8] sm:$0xff]
  %v1912 = vld [vmem:[%s3 + $0x1f0] sm:$0xff]
  %v1913 = vld [vmem:[%s3 + $0x1f8] sm:$0xff]
  %v1914 = vld [vmem:[%s4] sm:$0x3]
  %v1916 = vlaneseq
  %v1917 = vshrl.u32 %v1916, 7
  %v1918 = vsub.s32 0, %v1917
  %v1919 = vrot.slane %v1914, %v1918
  %v1920 = vlaneseq
  %v1921 = vshrl.u32 %v1920, 7
  %v1922 = vsub.s32 1, %v1921
  %v1923 = vrot.slane %v1914, %v1922
  %v1990 = vunpack.c.l.b16 %v1850
  %v1991 = vunpack.c.h.b16 %v1850
  %v1992 = vunpack.c.l.b16 %v1851
  %v1993 = vunpack.c.h.b16 %v1851
  %v1994 = vunpack.c.l.b16 %v1852
  %v1995 = vunpack.c.h.b16 %v1852
  %v1996 = vunpack.c.l.b16 %v1853
  %v1997 = vunpack.c.h.b16 %v1853
  %v1998 = vunpack.c.l.b16 %v1854
  %v1999 = vunpack.c.h.b16 %v1854
  %v2000 = vunpack.c.l.b16 %v1855
  %v2001 = vunpack.c.h.b16 %v1855
  %v2002 = vunpack.c.l.b16 %v1856
  %v2003 = vunpack.c.h.b16 %v1856
  %v2004 = vunpack.c.l.b16 %v1857
  %v2005 = vunpack.c.h.b16 %v1857
  %v2006 = vunpack.c.l.b16 %v1858
  %v2007 = vunpack.c.h.b16 %v1858
  %v2008 = vunpack.c.l.b16 %v1859
  %v2009 = vunpack.c.h.b16 %v1859
  %v2010 = vunpack.c.l.b16 %v1860
  %v2011 = vunpack.c.h.b16 %v1860
  %v2012 = vunpack.c.l.b16 %v1861
  %v2013 = vunpack.c.h.b16 %v1861
  %v2014 = vunpack.c.l.b16 %v1862
  %v2015 = vunpack.c.h.b16 %v1862
  %v2016 = vunpack.c.l.b16 %v1863
  %v2017 = vunpack.c.h.b16 %v1863
  %v2018 = vunpack.c.l.b16 %v1864
  %v2019 = vunpack.c.h.b16 %v1864
  %v2020 = vunpack.c.l.b16 %v1865
  %v2021 = vunpack.c.h.b16 %v1865
  %v2022 = vunpack.c.l.b16 %v1866
  %v2023 = vunpack.c.h.b16 %v1866
  %v2024 = vunpack.c.l.b16 %v1867
  %v2025 = vunpack.c.h.b16 %v1867
  %v2026 = vunpack.c.l.b16 %v1868
  %v2027 = vunpack.c.h.b16 %v1868
  %v2028 = vunpack.c.l.b16 %v1869
  %v2029 = vunpack.c.h.b16 %v1869
  %v2030 = vunpack.c.l.b16 %v1870
  %v2031 = vunpack.c.h.b16 %v1870
  %v2032 = vunpack.c.l.b16 %v1871
  %v2033 = vunpack.c.h.b16 %v1871
  %v2034 = vunpack.c.l.b16 %v1872
  %v2035 = vunpack.c.h.b16 %v1872
  %v2036 = vunpack.c.l.b16 %v1873
  %v2037 = vunpack.c.h.b16 %v1873
  %v2038 = vunpack.c.l.b16 %v1874
  %v2039 = vunpack.c.h.b16 %v1874
  %v2040 = vunpack.c.l.b16 %v1875
  %v2041 = vunpack.c.h.b16 %v1875
  %v2042 = vunpack.c.l.b16 %v1876
  %v2043 = vunpack.c.h.b16 %v1876
  %v2044 = vunpack.c.l.b16 %v1877
  %v2045 = vunpack.c.h.b16 %v1877
  %v2046 = vunpack.c.l.b16 %v1878
  %v2047 = vunpack.c.h.b16 %v1878
  %v2048 = vunpack.c.l.b16 %v1879
  %v2049 = vunpack.c.h.b16 %v1879
  %v2050 = vunpack.c.l.b16 %v1880
  %v2051 = vunpack.c.h.b16 %v1880
  %v2052 = vunpack.c.l.b16 %v1881
  %v2053 = vunpack.c.h.b16 %v1881
  %v2054 = vunpack.c.l.b16 %v1882
  %v2055 = vunpack.c.h.b16 %v1882
  %v2056 = vunpack.c.l.b16 %v1883
  %v2057 = vunpack.c.h.b16 %v1883
  %v2058 = vunpack.c.l.b16 %v1884
  %v2059 = vunpack.c.h.b16 %v1884
  %v2060 = vunpack.c.l.b16 %v1885
  %v2061 = vunpack.c.h.b16 %v1885
  %v2062 = vunpack.c.l.b16 %v1886
  %v2063 = vunpack.c.h.b16 %v1886
  %v2064 = vunpack.c.l.b16 %v1887
  %v2065 = vunpack.c.h.b16 %v1887
  %v2066 = vunpack.c.l.b16 %v1888
  %v2067 = vunpack.c.h.b16 %v1888
  %v2068 = vunpack.c.l.b16 %v1889
  %v2069 = vunpack.c.h.b16 %v1889
  %v2070 = vunpack.c.l.b16 %v1890
  %v2071 = vunpack.c.h.b16 %v1890
  %v2072 = vunpack.c.l.b16 %v1891
  %v2073 = vunpack.c.h.b16 %v1891
  %v2074 = vunpack.c.l.b16 %v1892
  %v2075 = vunpack.c.h.b16 %v1892
  %v2076 = vunpack.c.l.b16 %v1893
  %v2077 = vunpack.c.h.b16 %v1893
  %v2078 = vunpack.c.l.b16 %v1894
  %v2079 = vunpack.c.h.b16 %v1894
  %v2080 = vunpack.c.l.b16 %v1895
  %v2081 = vunpack.c.h.b16 %v1895
  %v2082 = vunpack.c.l.b16 %v1896
  %v2083 = vunpack.c.h.b16 %v1896
  %v2084 = vunpack.c.l.b16 %v1897
  %v2085 = vunpack.c.h.b16 %v1897
  %v2086 = vunpack.c.l.b16 %v1898
  %v2087 = vunpack.c.h.b16 %v1898
  %v2088 = vunpack.c.l.b16 %v1899
  %v2089 = vunpack.c.h.b16 %v1899
  %v2090 = vunpack.c.l.b16 %v1900
  %v2091 = vunpack.c.h.b16 %v1900
  %v2092 = vunpack.c.l.b16 %v1901
  %v2093 = vunpack.c.h.b16 %v1901
  %v2094 = vunpack.c.l.b16 %v1902
  %v2095 = vunpack.c.h.b16 %v1902
  %v2096 = vunpack.c.l.b16 %v1903
  %v2097 = vunpack.c.h.b16 %v1903
  %v2098 = vunpack.c.l.b16 %v1904
  %v2099 = vunpack.c.h.b16 %v1904
  %v2100 = vunpack.c.l.b16 %v1905
  %v2101 = vunpack.c.h.b16 %v1905
  %v2102 = vunpack.c.l.b16 %v1906
  %v2103 = vunpack.c.h.b16 %v1906
  %v2104 = vunpack.c.l.b16 %v1907
  %v2105 = vunpack.c.h.b16 %v1907
  %v2106 = vunpack.c.l.b16 %v1908
  %v2107 = vunpack.c.h.b16 %v1908
  %v2108 = vunpack.c.l.b16 %v1909
  %v2109 = vunpack.c.h.b16 %v1909
  %v2110 = vunpack.c.l.b16 %v1910
  %v2111 = vunpack.c.h.b16 %v1910
  %v2112 = vunpack.c.l.b16 %v1911
  %v2113 = vunpack.c.h.b16 %v1911
  %v2114 = vunpack.c.l.b16 %v1912
  %v2115 = vunpack.c.h.b16 %v1912
  %v2116 = vunpack.c.l.b16 %v1913
  %v2117 = vunpack.c.h.b16 %v1913
  %v2118 = vpack.c.b16 %v1992, %v1990
  %v2119 = vpack.c.b16 %v1993, %v1991
  %v2120 = vpack.c.b16 %v1996, %v1994
  %v2121 = vpack.c.b16 %v1997, %v1995
  %v2122 = vpack.c.b16 %v2000, %v1998
  %v2123 = vpack.c.b16 %v2001, %v1999
  %v2124 = vpack.c.b16 %v2004, %v2002
  %v2125 = vpack.c.b16 %v2005, %v2003
  %v2126 = vpack.c.b16 %v2008, %v2006
  %v2127 = vpack.c.b16 %v2009, %v2007
  %v2128 = vpack.c.b16 %v2012, %v2010
  %v2129 = vpack.c.b16 %v2013, %v2011
  %v2130 = vpack.c.b16 %v2016, %v2014
  %v2131 = vpack.c.b16 %v2017, %v2015
  %v2132 = vpack.c.b16 %v2020, %v2018
  %v2133 = vpack.c.b16 %v2021, %v2019
  %v2134 = vpack.c.b16 %v2024, %v2022
  %v2135 = vpack.c.b16 %v2025, %v2023
  %v2136 = vpack.c.b16 %v2028, %v2026
  %v2137 = vpack.c.b16 %v2029, %v2027
  %v2138 = vpack.c.b16 %v2032, %v2030
  %v2139 = vpack.c.b16 %v2033, %v2031
  %v2140 = vpack.c.b16 %v2036, %v2034
  %v2141 = vpack.c.b16 %v2037, %v2035
  %v2142 = vpack.c.b16 %v2040, %v2038
  %v2143 = vpack.c.b16 %v2041, %v2039
  %v2144 = vpack.c.b16 %v2044, %v2042
  %v2145 = vpack.c.b16 %v2045, %v2043
  %v2146 = vpack.c.b16 %v2048, %v2046
  %v2147 = vpack.c.b16 %v2049, %v2047
  %v2148 = vpack.c.b16 %v2052, %v2050
  %v2149 = vpack.c.b16 %v2053, %v2051
  %v2150 = vpack.c.b16 %v2056, %v2054
  %v2151 = vpack.c.b16 %v2057, %v2055
  %v2152 = vpack.c.b16 %v2060, %v2058
  %v2153 = vpack.c.b16 %v2061, %v2059
  %v2154 = vpack.c.b16 %v2064, %v2062
  %v2155 = vpack.c.b16 %v2065, %v2063
  %v2156 = vpack.c.b16 %v2068, %v2066
  %v2157 = vpack.c.b16 %v2069, %v2067
  %v2158 = vpack.c.b16 %v2072, %v2070
  %v2159 = vpack.c.b16 %v2073, %v2071
  %v2160 = vpack.c.b16 %v2076, %v2074
  %v2161 = vpack.c.b16 %v2077, %v2075
  %v2162 = vpack.c.b16 %v2080, %v2078
  %v2163 = vpack.c.b16 %v2081, %v2079
  %v2164 = vpack.c.b16 %v2084, %v2082
  %v2165 = vpack.c.b16 %v2085, %v2083
  %v2166 = vpack.c.b16 %v2088, %v2086
  %v2167 = vpack.c.b16 %v2089, %v2087
  %v2168 = vpack.c.b16 %v2092, %v2090
  %v2169 = vpack.c.b16 %v2093, %v2091
  %v2170 = vpack.c.b16 %v2096, %v2094
  %v2171 = vpack.c.b16 %v2097, %v2095
  %v2172 = vpack.c.b16 %v2100, %v2098
  %v2173 = vpack.c.b16 %v2101, %v2099
  %v2174 = vpack.c.b16 %v2104, %v2102
  %v2175 = vpack.c.b16 %v2105, %v2103
  %v2176 = vpack.c.b16 %v2108, %v2106
  %v2177 = vpack.c.b16 %v2109, %v2107
  %v2178 = vpack.c.b16 %v2112, %v2110
  %v2179 = vpack.c.b16 %v2113, %v2111
  %v2180 = vpack.c.b16 %v2116, %v2114
  %v2181 = vpack.c.b16 %v2117, %v2115
  %2246 = vmatprep.subr.bf16.mxu0 %v2133
  %2247 = vmatpush1.bf16.msra.mxu0 %v2132
  %2248 = vmatprep.subr.bf16.mxu0 %v2131
  %2249 = vmatpush1.bf16.msra.mxu0 %v2130
  %2250 = vmatprep.subr.bf16.mxu0 %v2129
  %2251 = vmatpush1.bf16.msra.mxu0 %v2128
  %2252 = vmatprep.subr.bf16.mxu0 %v2127
  %2253 = vmatpush1.bf16.msra.mxu0 %v2126
  %2254 = vmatprep.subr.bf16.mxu0 %v2125
  %2255 = vmatpush1.bf16.msra.mxu0 %v2124
  %2256 = vmatprep.subr.bf16.mxu0 %v2123
  %2257 = vmatpush1.bf16.msra.mxu0 %v2122
  %2258 = vmatprep.subr.bf16.mxu0 %v2121
  %2259 = vmatpush1.bf16.msra.mxu0 %v2120
  %2260 = vmatprep.subr.bf16.mxu0 %v2119
  %2261 = vmatpush1.bf16.msra.mxu0 %v2118
  %2262 = vmatprep.subr.bf16.mxu0 %v2149
  %2263 = vmatpush2.bf16.msra.mxu0 %v2148
  %2264 = vmatprep.subr.bf16.mxu0 %v2147
  %2265 = vmatpush2.bf16.msra.mxu0 %v2146
  %2266 = vmatprep.subr.bf16.mxu0 %v2145
  %2267 = vmatpush2.bf16.msra.mxu0 %v2144
  %2268 = vmatprep.subr.bf16.mxu0 %v2143
  %2269 = vmatpush2.bf16.msra.mxu0 %v2142
  %2270 = vmatprep.subr.bf16.mxu0 %v2141
  %2271 = vmatpush2.bf16.msra.mxu0 %v2140
  %2272 = vmatprep.subr.bf16.mxu0 %v2139
  %2273 = vmatpush2.bf16.msra.mxu0 %v2138
  %2274 = vmatprep.subr.bf16.mxu0 %v2137
  %2275 = vmatpush2.bf16.msra.mxu0 %v2136
  %2276 = vmatprep.subr.bf16.mxu0 %v2135
  %2277 = vmatpush2.bf16.msra.mxu0 %v2134
  %2278 = vmatprep.mubr.bf16.mxu0 %v1843
  %2279 = vmatmul.mubr.bf16.gmra.mxu0 %v1842
  %v2280 = vpop.f32.mrf.mxu0
  %v2281 = vadd.f32 %v1919, %v2280
  %v2282 = vpop.f32.mrf.mxu0
  %v2283 = vadd.f32 %v1923, %v2282
  %v2284 = vpop.f32.mrf.mxu0
  %v2285 = vadd.f32 %v1919, %v2284
  %v2286 = vpop.f32.mrf.mxu0
  %v2287 = vadd.f32 %v1923, %v2286
  %2288 = vmatprep.mubr.bf16.mxu0 %v1847
  %2289 = vmatmul.mubr.bf16.gmra.mxu0 %v1846
  %v2290 = vpop.f32.mrf.mxu0
  %v2291 = vadd.f32 %v1919, %v2290
  %v2292 = vpop.f32.mrf.mxu0
  %v2293 = vadd.f32 %v1923, %v2292
  %v2294 = vpop.f32.mrf.mxu0
  %v2295 = vadd.f32 %v1919, %v2294
  %v2296 = vpop.f32.mrf.mxu0
  %v2297 = vadd.f32 %v1923, %v2296
  %2298 = vdwg.mxu0
  %2299 = vmatprep.subr.bf16.mxu0 %v2165
  %2300 = vmatpush1.bf16.msra.mxu0 %v2164
  %2301 = vmatprep.subr.bf16.mxu0 %v2163
  %2302 = vmatpush1.bf16.msra.mxu0 %v2162
  %2303 = vmatprep.subr.bf16.mxu0 %v2161
  %2304 = vmatpush1.bf16.msra.mxu0 %v2160
  %2305 = vmatprep.subr.bf16.mxu0 %v2159
  %2306 = vmatpush1.bf16.msra.mxu0 %v2158
  %2307 = vmatprep.subr.bf16.mxu0 %v2157
  %2308 = vmatpush1.bf16.msra.mxu0 %v2156
  %2309 = vmatprep.subr.bf16.mxu0 %v2155
  %2310 = vmatpush1.bf16.msra.mxu0 %v2154
  %2311 = vmatprep.subr.bf16.mxu0 %v2153
  %2312 = vmatpush1.bf16.msra.mxu0 %v2152
  %2313 = vmatprep.subr.bf16.mxu0 %v2151
  %2314 = vmatpush1.bf16.msra.mxu0 %v2150
  %2315 = vmatprep.subr.bf16.mxu0 %v2181
  %2316 = vmatpush2.bf16.msra.mxu0 %v2180
  %2317 = vmatprep.subr.bf16.mxu0 %v2179
  %2318 = vmatpush2.bf16.msra.mxu0 %v2178
  %2319 = vmatprep.subr.bf16.mxu0 %v2177
  %2320 = vmatpush2.bf16.msra.mxu0 %v2176
  %2321 = vmatprep.subr.bf16.mxu0 %v2175
  %2322 = vmatpush2.bf16.msra.mxu0 %v2174
  %2323 = vmatprep.subr.bf16.mxu0 %v2173
  %2324 = vmatpush2.bf16.msra.mxu0 %v2172
  %2325 = vmatprep.subr.bf16.mxu0 %v2171
  %2326 = vmatpush2.bf16.msra.mxu0 %v2170
  %2327 = vmatprep.subr.bf16.mxu0 %v2169
  %2328 = vmatpush2.bf16.msra.mxu0 %v2168
  %2329 = vmatprep.subr.bf16.mxu0 %v2167
  %2330 = vmatpush2.bf16.msra.mxu0 %v2166
  %2331 = vmatprep.mubr.bf16.mxu0 %v1845
  %2332 = vmatmul.mubr.bf16.gmra.mxu0 %v1844
  %v2333 = vpop.f32.mrf.mxu0
  %v2334 = vadd.f32 %v2281, %v2333
  %v2335 = vpop.f32.mrf.mxu0
  %v2336 = vadd.f32 %v2283, %v2335
  %v2337 = vpop.f32.mrf.mxu0
  %v2338 = vadd.f32 %v2285, %v2337
  %v2339 = vpop.f32.mrf.mxu0
  %v2340 = vadd.f32 %v2287, %v2339
  %2341 = vmatprep.mubr.bf16.mxu0 %v1849
  %2342 = vmatmul.mubr.bf16.gmra.mxu0 %v1848
  %v2343 = vpop.f32.mrf.mxu0
  %v2344 = vadd.f32 %v2291, %v2343
  %v2345 = vpop.f32.mrf.mxu0
  %v2346 = vadd.f32 %v2293, %v2345
  %v2347 = vpop.f32.mrf.mxu0
  %v2348 = vadd.f32 %v2295, %v2347
  %v2349 = vpop.f32.mrf.mxu0
  %v2350 = vadd.f32 %v2297, %v2349
  %2351 = vdwg.mxu0
  %v2352 = vadd.f32 %v2334, 0.0
  %v2353 = vadd.f32 %v2336, 0.0
  %vm2354 = vcmp.gt.f32.partialorder %v2352, 0.5
  %vm2355 = vcmp.gt.f32.partialorder %v2353, 0.5
  %v2356 = vsel %vm2354, 1, 0
  %v2357 = vsel %vm2355, 1, 0
  %v2358 = vcvt.s32.f32 %v2356
  %v2359 = vcvt.s32.f32 %v2357
  %v2360 = vsub.f32 1.0, %v2358
  %v2361 = vsub.f32 1.0, %v2359
  %v2362 = vmul.f32 %v2360, 0.2
  %v2363 = vmul.f32 %v2361, 0.2
  %v2364 = vmul.f32 %v2352, %v2362
  %v2365 = vmul.f32 %v2353, %v2363
  %v2366 = vadd.f32 %v2364, %v2338
  %v2367 = vadd.f32 %v2365, %v2340
  %vm2368 = vcmp.gt.f32.partialorder %v2366, 0.5
  %vm2369 = vcmp.gt.f32.partialorder %v2367, 0.5
  %v2370 = vsel %vm2368, 1, 0
  %v2371 = vsel %vm2369, 1, 0
  %v2372 = vcvt.s32.f32 %v2370
  %v2373 = vcvt.s32.f32 %v2371
  %v2374 = vsub.f32 1.0, %v2372
  %v2375 = vsub.f32 1.0, %v2373
  %v2376 = vmul.f32 %v2374, 0.2
  %v2377 = vmul.f32 %v2375, 0.2
  %v2378 = vmul.f32 %v2366, %v2376
  %v2379 = vmul.f32 %v2367, %v2377
  %v2380 = vadd.f32 %v2378, %v2344
  %v2381 = vadd.f32 %v2379, %v2346
  %vm2382 = vcmp.gt.f32.partialorder %v2380, 0.5
  %vm2383 = vcmp.gt.f32.partialorder %v2381, 0.5
  %v2384 = vsel %vm2382, 1, 0
  %v2385 = vsel %vm2383, 1, 0
  %v2386 = vcvt.s32.f32 %v2384
  %v2387 = vcvt.s32.f32 %v2385
  %v2388 = vsub.f32 1.0, %v2386
  %v2389 = vsub.f32 1.0, %v2387
  %v2390 = vmul.f32 %v2388, 0.2
  %v2391 = vmul.f32 %v2389, 0.2
  %v2392 = vmul.f32 %v2380, %v2390
  %v2393 = vmul.f32 %v2381, %v2391
  %v2394 = vadd.f32 %v2392, %v2348
  %v2395 = vadd.f32 %v2393, %v2350
  %vm2396 = vcmp.gt.f32.partialorder %v2394, 0.5
  %vm2397 = vcmp.gt.f32.partialorder %v2395, 0.5
  %v2398 = vsel %vm2396, 1, 0
  %v2399 = vsel %vm2397, 1, 0
  %v2400 = vcvt.s32.f32 %v2398
  %v2401 = vcvt.s32.f32 %v2399
  %v2402 = vpack.c.bf16 %v2372, %v2358
  %v2403 = vpack.c.bf16 %v2373, %v2359
  %v2404 = vpack.c.bf16 %v2400, %v2386
  %v2405 = vpack.c.bf16 %v2401, %v2387
  %v2406 = vld [vmem:[%s5] sm:$0xf]
  %v2407 = vld [vmem:[%s5 + $0x4] sm:$0xf]
  %v2408 = vld [vmem:[%s5 + $0x8] sm:$0xf]
  %v2409 = vld [vmem:[%s5 + $0xc] sm:$0xf]
  %v2410 = vld [vmem:[%s5 + $0x10] sm:$0xf]
  %v2411 = vld [vmem:[%s5 + $0x14] sm:$0xf]
  %v2412 = vld [vmem:[%s5 + $0x18] sm:$0xf]
  %v2413 = vld [vmem:[%s5 + $0x1c] sm:$0xf]
  %v2414 = vld [vmem:[%s5 + $0x20] sm:$0xf]
  %v2415 = vld [vmem:[%s5 + $0x24] sm:$0xf]
  %v2416 = vld [vmem:[%s5 + $0x28] sm:$0xf]
  %v2417 = vld [vmem:[%s5 + $0x2c] sm:$0xf]
  %v2418 = vld [vmem:[%s5 + $0x30] sm:$0xf]
  %v2419 = vld [vmem:[%s5 + $0x34] sm:$0xf]
  %v2420 = vld [vmem:[%s5 + $0x38] sm:$0xf]
  %v2421 = vld [vmem:[%s5 + $0x3c] sm:$0xf]
  %v2422 = vld [vmem:[%s5 + $0x40] sm:$0xf]
  %v2423 = vld [vmem:[%s5 + $0x44] sm:$0xf]
  %v2424 = vld [vmem:[%s5 + $0x48] sm:$0xf]
  %v2425 = vld [vmem:[%s5 + $0x4c] sm:$0xf]
  %v2426 = vld [vmem:[%s5 + $0x50] sm:$0xf]
  %v2427 = vld [vmem:[%s5 + $0x54] sm:$0xf]
  %v2428 = vld [vmem:[%s5 + $0x58] sm:$0xf]
  %v2429 = vld [vmem:[%s5 + $0x5c] sm:$0xf]
  %v2430 = vld [vmem:[%s5 + $0x60] sm:$0xf]
  %v2431 = vld [vmem:[%s5 + $0x64] sm:$0xf]
  %v2432 = vld [vmem:[%s5 + $0x68] sm:$0xf]
  %v2433 = vld [vmem:[%s5 + $0x6c] sm:$0xf]
  %v2434 = vld [vmem:[%s5 + $0x70] sm:$0xf]
  %v2435 = vld [vmem:[%s5 + $0x74] sm:$0xf]
  %v2436 = vld [vmem:[%s5 + $0x78] sm:$0xf]
  %v2437 = vld [vmem:[%s5 + $0x7c] sm:$0xf]
  %v2438 = vld [vmem:[%s6] sm:$0x1]
  %v2440 = vlaneseq
  %v2441 = vshrl.u32 %v2440, 7
  %v2442 = vsub.s32 0, %v2441
  %v2443 = vrot.slane %v2438, %v2442
  %v2477 = vunpack.c.l.b16 %v2406
  %v2478 = vunpack.c.l.b16 %v2407
  %v2479 = vunpack.c.l.b16 %v2408
  %v2480 = vunpack.c.l.b16 %v2409
  %v2481 = vunpack.c.l.b16 %v2410
  %v2482 = vunpack.c.l.b16 %v2411
  %v2483 = vunpack.c.l.b16 %v2412
  %v2484 = vunpack.c.l.b16 %v2413
  %v2485 = vunpack.c.l.b16 %v2414
  %v2486 = vunpack.c.l.b16 %v2415
  %v2487 = vunpack.c.l.b16 %v2416
  %v2488 = vunpack.c.l.b16 %v2417
  %v2489 = vunpack.c.l.b16 %v2418
  %v2490 = vunpack.c.l.b16 %v2419
  %v2491 = vunpack.c.l.b16 %v2420
  %v2492 = vunpack.c.l.b16 %v2421
  %v2493 = vunpack.c.l.b16 %v2422
  %v2494 = vunpack.c.l.b16 %v2423
  %v2495 = vunpack.c.l.b16 %v2424
  %v2496 = vunpack.c.l.b16 %v2425
  %v2497 = vunpack.c.l.b16 %v2426
  %v2498 = vunpack.c.l.b16 %v2427
  %v2499 = vunpack.c.l.b16 %v2428
  %v2500 = vunpack.c.l.b16 %v2429
  %v2501 = vunpack.c.l.b16 %v2430
  %v2502 = vunpack.c.l.b16 %v2431
  %v2503 = vunpack.c.l.b16 %v2432
  %v2504 = vunpack.c.l.b16 %v2433
  %v2505 = vunpack.c.l.b16 %v2434
  %v2506 = vunpack.c.l.b16 %v2435
  %v2507 = vunpack.c.l.b16 %v2436
  %v2508 = vunpack.c.l.b16 %v2437
  %v2509 = vpack.c.b16 %v2478, %v2477
  %v2510 = vpack.c.b16 %v2480, %v2479
  %v2511 = vpack.c.b16 %v2482, %v2481
  %v2512 = vpack.c.b16 %v2484, %v2483
  %v2513 = vpack.c.b16 %v2486, %v2485
  %v2514 = vpack.c.b16 %v2488, %v2487
  %v2515 = vpack.c.b16 %v2490, %v2489
  %v2516 = vpack.c.b16 %v2492, %v2491
  %v2517 = vpack.c.b16 %v2494, %v2493
  %v2518 = vpack.c.b16 %v2496, %v2495
  %v2519 = vpack.c.b16 %v2498, %v2497
  %v2520 = vpack.c.b16 %v2500, %v2499
  %v2521 = vpack.c.b16 %v2502, %v2501
  %v2522 = vpack.c.b16 %v2504, %v2503
  %v2523 = vpack.c.b16 %v2506, %v2505
  %v2524 = vpack.c.b16 %v2508, %v2507
  %2541 = vmatprep.subr.bf16.mxu0 0
  %2542 = vmatpush1.bf16.msra.mxu0 %v2516
  %2543 = vmatprep.subr.bf16.mxu0 0
  %2544 = vmatpush1.bf16.msra.mxu0 %v2515
  %2545 = vmatprep.subr.bf16.mxu0 0
  %2546 = vmatpush1.bf16.msra.mxu0 %v2514
  %2547 = vmatprep.subr.bf16.mxu0 0
  %2548 = vmatpush1.bf16.msra.mxu0 %v2513
  %2549 = vmatprep.subr.bf16.mxu0 0
  %2550 = vmatpush1.bf16.msra.mxu0 %v2512
  %2551 = vmatprep.subr.bf16.mxu0 0
  %2552 = vmatpush1.bf16.msra.mxu0 %v2511
  %2553 = vmatprep.subr.bf16.mxu0 0
  %2554 = vmatpush1.bf16.msra.mxu0 %v2510
  %2555 = vmatprep.subr.bf16.mxu0 0
  %2556 = vmatpush1.bf16.msra.mxu0 %v2509
  %2557 = vmatprep.subr.bf16.mxu0 0
  %2558 = vmatpush2.bf16.msra.mxu0 %v2524
  %2559 = vmatprep.subr.bf16.mxu0 0
  %2560 = vmatpush2.bf16.msra.mxu0 %v2523
  %2561 = vmatprep.subr.bf16.mxu0 0
  %2562 = vmatpush2.bf16.msra.mxu0 %v2522
  %2563 = vmatprep.subr.bf16.mxu0 0
  %2564 = vmatpush2.bf16.msra.mxu0 %v2521
  %2565 = vmatprep.subr.bf16.mxu0 0
  %2566 = vmatpush2.bf16.msra.mxu0 %v2520
  %2567 = vmatprep.subr.bf16.mxu0 0
  %2568 = vmatpush2.bf16.msra.mxu0 %v2519
  %2569 = vmatprep.subr.bf16.mxu0 0
  %2570 = vmatpush2.bf16.msra.mxu0 %v2518
  %2571 = vmatprep.subr.bf16.mxu0 0
  %2572 = vmatpush2.bf16.msra.mxu0 %v2517
  %2573 = vmatprep.mubr.bf16.mxu0 %v2403
  %2574 = vmatmul.mubr.bf16.gmra.mxu0 %v2402
  %v2575 = vpop.f32.mrf.mxu0
  %v2576 = vadd.f32 %v2443, %v2575
  %v2577 = vpop.f32.mrf.mxu0
  %v2578 = vpop.f32.mrf.mxu0
  %v2579 = vadd.f32 %v2443, %v2578
  %v2580 = vpop.f32.mrf.mxu0
  %2581 = vmatprep.mubr.bf16.mxu0 %v2405
  %2582 = vmatmul.mubr.bf16.gmra.mxu0 %v2404
  %v2583 = vpop.f32.mrf.mxu0
  %v2584 = vadd.f32 %v2443, %v2583
  %v2585 = vpop.f32.mrf.mxu0
  %v2586 = vpop.f32.mrf.mxu0
  %v2587 = vadd.f32 %v2443, %v2586
  %v2588 = vpop.f32.mrf.mxu0
  %2589 = vdwg.mxu0
  %v2590 = vadd.f32 %v2576, 0.0
  %vm2591 = vcmp.gt.f32.partialorder %v2590, 0.5
  %v2592 = vsel %vm2591, 1, 0
  %v2593 = vcvt.s32.f32 %v2592
  %v2594 = vsub.f32 1.0, %v2593
  %v2595 = vmul.f32 %v2594, 0.2
  %v2596 = vmul.f32 %v2590, %v2595
  %v2597 = vadd.f32 %v2596, %v2579
  %vm2598 = vcmp.gt.f32.partialorder %v2597, 0.5
  %v2599 = vsel %vm2598, 1, 0
  %v2600 = vcvt.s32.f32 %v2599
  %v2601 = vsub.f32 1.0, %v2600
  %v2602 = vmul.f32 %v2601, 0.2
  %v2603 = vmul.f32 %v2597, %v2602
  %v2604 = vadd.f32 %v2603, %v2584
  %vm2605 = vcmp.gt.f32.partialorder %v2604, 0.5
  %v2606 = vsel %vm2605, 1, 0
  %v2607 = vcvt.s32.f32 %v2606
  %v2608 = vsub.f32 1.0, %v2607
  %v2609 = vmul.f32 %v2608, 0.2
  %v2610 = vmul.f32 %v2604, %v2609
  %v2611 = vadd.f32 %v2610, %v2587
  %vm2612 = vcmp.gt.f32.partialorder %v2611, 0.5
  %v2613 = vsel %vm2612, 1, 0
  %v2614 = vcvt.s32.f32 %v2613
  %v2615 = vadd.f32 %v2593, %v2600
  %v2616 = vadd.f32 %v2615, %v2607
  %v2617 = vadd.f32 %v2616, %v2614
  %v2618 = vmul.f32 %v2617, 0.25
  %vm2619 = vcmask 80896
  %2620 = vst.msk [vmem:[%s7] sm:$0xff] %vm2619, %v2618
  // Predicated region
  $region30: #{mnist_fc_forward.1} parent=0 // pred_check
    _
  $region31: #{mnist_fc_forward.1} parent=0 // pred_check_branch
    %2622 = sbr.rel (0) target = $region33
  $region32: #{mnist_fc_forward.1} parent=0 // pred_region
    _
  $region33: #{mnist_fc_forward.1} parent=0 // pred_fallthru
    _
  // Predicated region
  $region34: #{mnist_fc_forward.1} parent=0 // pred_check
    _
  $region35: #{mnist_fc_forward.1} parent=0 // pred_check_branch
    %2624 = sbr.rel (0) target = $region37
  $region36: #{mnist_fc_forward.1} parent=0 // pred_region
    _
  $region37: #{mnist_fc_forward.1} parent=0 // pred_fallthru
    _

</llo_original>
